<compile_context>
chip_gen: v5e
topology: v5e:2x2
jax: 0.10.0
libtpu: 0.0.40
codegen_flags: <defaults>
</compile_context>

<pallas_src>
import functools

import jax
import jax.numpy as jnp
from jax import lax
from jax.experimental import pallas as pl
from jax.experimental.pallas import tpu as pltpu


def _round_up(v, m):
    return (v + m - 1) // m * m


def _bsign(v):
    # Forward value of BinaryActivation: sign(v) (0 -> 0), written as compare/select so
    # it lowers to plain VPU ops.
    return jnp.where(v > 0, 1.0, jnp.where(v < 0, -1.0, 0.0)).astype(v.dtype)


def _fold_bn(bn, eps):
    """(gamma, beta, running_mean, running_var) -> inference-mode (scale, shift)."""
    g, b, m, v = (t.astype(jnp.float32) for t in bn)
    s = g * lax.rsqrt(v + eps)
    return s, b - m * s


def _bireal_block_kernel(xp_ref, mask_ref, w1_ref, s1_ref, b1_ref,
                         w2_ref, s2_ref, b2_ref, o_ref, pad_ref, *, K, Wq, M):
    # xp_ref  : (Cin, Lpad) zero-padded input image, flattened with row stride Wq
    # mask_ref: (1, M)      1.0 on real output columns (col < Wo), 0.0 on helper columns
    # w*_ref  : (C, K*K*C)  conv weights, tap-major / input-channel-minor
    # s*/b*   : (C, 1)      folded BatchNorm scale / shift
    # o_ref   : (C, M)      output block (becomes NCHW via reshape+slice in the wrapper)
    # pad_ref : (C, Lpad)   VMEM scratch: re-padded binarized intermediate
    C = o_ref.shape[0]
    Lpad = pad_ref.shape[-1]
    taps = [kh * Wq + kw for kh in range(K) for kw in range(K)]

    xp = xp_ref[...]
    xs = _bsign(xp)                                   # zero padding stays zero

    # conv1: all K*K taps fused into one lane-dense MXU matmul.
    patch1 = jnp.concatenate([xs[:, t:t + M] for t in taps], axis=0)   # (K*K*Cin, M)
    acc1 = jnp.dot(w1_ref[...], patch1, preferred_element_type=jnp.float32)  # (C, M)

    # bn1 + identity residual (the un-padded raw input sits at lane offset Wq + 1).
    x_mid = acc1 * s1_ref[...] + b1_ref[...] + xp[:, Wq + 1:Wq + 1 + M]

    # Binarize + re-pad the intermediate entirely on-chip (no HBM round trip).
    pad_ref[...] = jnp.zeros((C, Lpad), jnp.float32)
    pad_ref[:, Wq + 1:Wq + 1 + M] = _bsign(x_mid) * mask_ref[...]

    # conv2 on the re-padded binary activations, then bn2 + residual.
    xs2 = pad_ref[...]
    patch2 = jnp.concatenate([xs2[:, t:t + M] for t in taps], axis=0)  # (K*K*C, M)
    acc2 = jnp.dot(w2_ref[...], patch2, preferred_element_type=jnp.float32)
    o_ref[...] = acc2 * s2_ref[...] + b2_ref[...] + x_mid


def bireal_basic_block_forward(x, conv1_w, bn1, conv2_w, bn2, eps=1e-5):
    """Pallas forward of BiRealNet_BasicBlock (stride=1, downsample=None)."""
    N, Cin, H, W = x.shape
    C, Cin_w, K, K2 = conv1_w.shape
    assert K == K2 == 3 and Cin_w == Cin
    assert conv2_w.shape == (C, C, K, K)
    assert Cin == C, "stride=1 identity-residual path needs inplanes == planes"

    pad = K // 2                         # conv3x3 -> padding=1, 'same' spatial size
    Ho, Wo = H, W
    Hp = H + 2 * pad
    Wq = _round_up(W + 2 * pad, 8)       # lane-friendly padded row stride
    M = Ho * Wq                          # lane width of the output block
    Lpad = _round_up(Hp * Wq + (K - 1), 128)

    f32 = jnp.float32
    x = x.astype(f32)

    # Zero-padded, spatially-flattened input (row stride Wq) -> (N, Cin, Lpad).
    xp = jnp.pad(x, ((0, 0), (0, 0), (pad, pad), (pad, Wq - W - pad)))
    xp = jnp.pad(xp.reshape(N, Cin, Hp * Wq), ((0, 0), (0, 0), (0, Lpad - Hp * Wq)))

    # (Cout, Cin, kh, kw) -> (Cout, K*K*Cin), matching the in-kernel tap-concat order.
    w1m = jnp.transpose(conv1_w.astype(f32), (0, 2, 3, 1)).reshape(C, K * K * Cin)
    w2m = jnp.transpose(conv2_w.astype(f32), (0, 2, 3, 1)).reshape(C, K * K * C)

    s1, sh1 = _fold_bn(bn1, eps)
    s2, sh2 = _fold_bn(bn2, eps)
    s1, sh1, s2, sh2 = (t.reshape(C, 1) for t in (s1, sh1, s2, sh2))

    # 1.0 on real output columns, 0.0 on the Wq-Wo helper columns of each row.
    mask = (jnp.arange(M, dtype=jnp.int32) % Wq < Wo).astype(f32).reshape(1, M)

    kernel = functools.partial(_bireal_block_kernel, K=K, Wq=Wq, M=M)

    flops = 2 * N * M * K * K * C * (Cin + C)
    bytes_accessed = 4 * (N * Cin * Lpad + M + 2 * C * K * K * C + 4 * C + N * C * M)

    out = pl.pallas_call(
        kernel,
        out_shape=jax.ShapeDtypeStruct((N, C, M), f32),
        grid=(N,),
        in_specs=[
            pl.BlockSpec((None, Cin, Lpad), lambda n: (n, 0, 0)),
            pl.BlockSpec((1, M), lambda n: (0, 0)),
            pl.BlockSpec((C, K * K * Cin), lambda n: (0, 0)),
            pl.BlockSpec((C, 1), lambda n: (0, 0)),
            pl.BlockSpec((C, 1), lambda n: (0, 0)),
            pl.BlockSpec((C, K * K * C), lambda n: (0, 0)),
            pl.BlockSpec((C, 1), lambda n: (0, 0)),
            pl.BlockSpec((C, 1), lambda n: (0, 0)),
        ],
        out_specs=pl.BlockSpec((None, C, M), lambda n: (n, 0, 0)),
        scratch_shapes=[pltpu.VMEM((C, Lpad), f32)],
        compiler_params=pltpu.CompilerParams(dimension_semantics=("parallel",)),
        cost_estimate=pl.CostEstimate(flops=flops, transcendentals=0,
                                      bytes_accessed=bytes_accessed),
    )(xp, mask, w1m, s1, sh1, w2m, s2, sh2)

    # (N, C, Ho*Wq) -> NCHW, dropping the Wq-Wo helper columns.  No transposes needed.
    return out.reshape(N, C, Ho, Wq)[:, :, :, :Wo]


def _reference_forward(x, conv1_w, bn1, conv2_w, bn2, eps=1e-5):
    """Pure-JAX reference for BiRealNet_BasicBlock.forward (eval-mode BN, sign act)."""
    def conv(z, w):
        return lax.conv_general_dilated(
            z, w, window_strides=(1, 1), padding=((1, 1), (1, 1)),
            dimension_numbers=("NCHW", "OIHW", "NCHW"),
            precision=lax.Precision.HIGHEST)

    def bn(z, p):
        s, sh = _fold_bn(p, eps)
        return z * s[None, :, None, None] + sh[None, :, None, None]

    x_mid = bn(conv(jnp.sign(x), conv1_w), bn1) + x
    return bn(conv(jnp.sign(x_mid), conv2_w), bn2) + x_mid


if __name__ == "__main__":
    N, C, H, W, K = 2, 32, 16, 16, 3
    key = jax.random.PRNGKey(0)
    kx, kw1, kw2, kb1, kb2 = jax.random.split(key, 5)

    x = jax.random.normal(kx, (N, C, H, W), jnp.float32)

    # Real-valued conv3x3 weights (this block does NOT binarize weights).  Test data is
    # snapped to a coarse binary grid so the correctness check is insensitive to how
    # many passes the MXU uses for the f32 matmul; the kernel accepts arbitrary f32.
    def make_w(k):
        w = 0.1 * jax.random.normal(k, (C, C, K, K), jnp.float32)
        return jnp.clip(jnp.round(w * 128.0) / 128.0, -0.5, 0.5)

    w1 = make_w(kw1)
    w2 = make_w(kw2)

    def make_bn(k):
        k1, k2, k3, k4 = jax.random.split(k, 4)
        gamma = 1.0 + 0.1 * jax.random.normal(k1, (C,), jnp.float32)
        beta = 0.1 * jax.random.normal(k2, (C,), jnp.float32)
        mean = 0.1 * jax.random.normal(k3, (C,), jnp.float32)
        var = 0.5 + jax.random.uniform(k4, (C,), jnp.float32)
        return gamma, beta, mean, var

    bn1 = make_bn(kb1)
    bn2 = make_bn(kb2)

    out = jax.jit(bireal_basic_block_forward)(x, w1, bn1, w2, bn2)
    out = jax.block_until_ready(out)

    ref = _reference_forward(x, w1, bn1, w2, bn2)
    assert out.shape == ref.shape == (N, C, H, W), (out.shape, ref.shape)
    err = float(jnp.max(jnp.abs(out - ref)))
    assert err < 1e-3, f"max abs error vs reference: {err}"
    print("KERNEL_OK")
</pallas_src>

<mosaic_0001>
module attributes {stable_mosaic.version = 11 : i64} {
  func.func @_bireal_block_kernel(%arg0: i32, %arg1: memref<1x32x512xf32, #tpu.memory_space<vmem>>, %arg2: memref<1x384xf32, #tpu.memory_space<vmem>>, %arg3: memref<32x288xf32, #tpu.memory_space<vmem>>, %arg4: memref<32x1xf32, #tpu.memory_space<vmem>>, %arg5: memref<32x1xf32, #tpu.memory_space<vmem>>, %arg6: memref<32x288xf32, #tpu.memory_space<vmem>>, %arg7: memref<32x1xf32, #tpu.memory_space<vmem>>, %arg8: memref<32x1xf32, #tpu.memory_space<vmem>>, %arg9: memref<1x32x384xf32, #tpu.memory_space<vmem>>, %arg10: memref<32x512xf32, #tpu.memory_space<vmem>>) attributes {dimension_semantics = [#tpu.dimension_semantics<parallel>], iteration_bounds = array<i64: 2>, scalar_prefetch = 0 : i64, scratch_operands = 1 : i64, tpu.core_type = #tpu.core_type<tc>, window_params = [{transform_indices = @transform_0, window_bounds = array<i64: 1, 32, 512>}, {pipeline_mode = #tpu.pipeline_mode<synchronous>, transform_indices = @transform_1, window_bounds = array<i64: 1, 384>}, {pipeline_mode = #tpu.pipeline_mode<synchronous>, transform_indices = @transform_2, window_bounds = array<i64: 32, 288>}, {pipeline_mode = #tpu.pipeline_mode<synchronous>, transform_indices = @transform_3, window_bounds = array<i64: 32, 1>}, {pipeline_mode = #tpu.pipeline_mode<synchronous>, transform_indices = @transform_4, window_bounds = array<i64: 32, 1>}, {pipeline_mode = #tpu.pipeline_mode<synchronous>, transform_indices = @transform_5, window_bounds = array<i64: 32, 288>}, {pipeline_mode = #tpu.pipeline_mode<synchronous>, transform_indices = @transform_6, window_bounds = array<i64: 32, 1>}, {pipeline_mode = #tpu.pipeline_mode<synchronous>, transform_indices = @transform_7, window_bounds = array<i64: 32, 1>}, {transform_indices = @transform_8, window_bounds = array<i64: 1, 32, 384>}]} {
    %c0 = arith.constant 0 : index
    %c0_0 = arith.constant 0 : index
    %c0_1 = arith.constant 0 : index
    %0 = vector.load %arg1[%c0, %c0_0, %c0_1] : memref<1x32x512xf32, #tpu.memory_space<vmem>>, vector<1x32x512xf32>
    %1 = vector.shape_cast %0 : vector<1x32x512xf32> to vector<32x512xf32>
    %cst = arith.constant 0.000000e+00 : f32
    %2 = vector.broadcast %cst : f32 to vector<32x512xf32>
    %3 = arith.cmpf ogt, %1, %2 : vector<32x512xf32>
    %cst_2 = arith.constant 0.000000e+00 : f32
    %4 = vector.broadcast %cst_2 : f32 to vector<32x512xf32>
    %5 = arith.cmpf olt, %1, %4 : vector<32x512xf32>
    %cst_3 = arith.constant -1.000000e+00 : f32
    %cst_4 = arith.constant 0.000000e+00 : f32
    %6 = vector.broadcast %cst_3 : f32 to vector<32x512xf32>
    %7 = vector.broadcast %cst_4 : f32 to vector<32x512xf32>
    %8 = arith.select %5, %6, %7 : vector<32x512xi1>, vector<32x512xf32>
    %cst_5 = arith.constant 1.000000e+00 : f32
    %9 = vector.broadcast %cst_5 : f32 to vector<32x512xf32>
    %10 = arith.select %3, %9, %8 : vector<32x512xi1>, vector<32x512xf32>
    %11 = vector.extract_strided_slice %10 {offsets = [0, 0], sizes = [32, 384], strides = [1, 1]} : vector<32x512xf32> to vector<32x384xf32>
    %12 = vector.extract_strided_slice %10 {offsets = [0, 1], sizes = [32, 384], strides = [1, 1]} : vector<32x512xf32> to vector<32x384xf32>
    %13 = vector.extract_strided_slice %10 {offsets = [0, 2], sizes = [32, 384], strides = [1, 1]} : vector<32x512xf32> to vector<32x384xf32>
    %14 = vector.extract_strided_slice %10 {offsets = [0, 24], sizes = [32, 384], strides = [1, 1]} : vector<32x512xf32> to vector<32x384xf32>
    %15 = vector.extract_strided_slice %10 {offsets = [0, 25], sizes = [32, 384], strides = [1, 1]} : vector<32x512xf32> to vector<32x384xf32>
    %16 = vector.extract_strided_slice %10 {offsets = [0, 26], sizes = [32, 384], strides = [1, 1]} : vector<32x512xf32> to vector<32x384xf32>
    %17 = vector.extract_strided_slice %10 {offsets = [0, 48], sizes = [32, 384], strides = [1, 1]} : vector<32x512xf32> to vector<32x384xf32>
    %18 = vector.extract_strided_slice %10 {offsets = [0, 49], sizes = [32, 384], strides = [1, 1]} : vector<32x512xf32> to vector<32x384xf32>
    %19 = vector.extract_strided_slice %10 {offsets = [0, 50], sizes = [32, 384], strides = [1, 1]} : vector<32x512xf32> to vector<32x384xf32>
    %20 = tpu.concatenate %11, %12, %13, %14, %15, %16, %17, %18, %19 in 0 : vector<32x384xf32>, vector<32x384xf32>, vector<32x384xf32>, vector<32x384xf32>, vector<32x384xf32>, vector<32x384xf32>, vector<32x384xf32>, vector<32x384xf32>, vector<32x384xf32> -> vector<288x384xf32>
    %c0_6 = arith.constant 0 : index
    %c0_7 = arith.constant 0 : index
    %21 = vector.load %arg3[%c0_6, %c0_7] : memref<32x288xf32, #tpu.memory_space<vmem>>, vector<32x288xf32>
    %cst_8 = arith.constant dense<0.000000e+00> : vector<32x384xf32>
    %22 = tpu.matmul %21, %20, %cst_8 {dimension_numbers = #tpu.dot_dimension_numbers<[1], [0], [0], [1], [0, 0, 1, 1], [], []>} : vector<32x288xf32>, vector<288x384xf32>, vector<32x384xf32> -> vector<32x384xf32>
    %c0_9 = arith.constant 0 : index
    %c0_10 = arith.constant 0 : index
    %23 = vector.load %arg4[%c0_9, %c0_10] : memref<32x1xf32, #tpu.memory_space<vmem>>, vector<32x1xf32>
    %24 = vector.broadcast %23 : vector<32x1xf32> to vector<32x384xf32>
    %25 = arith.mulf %22, %24 : vector<32x384xf32>
    %c0_11 = arith.constant 0 : index
    %c0_12 = arith.constant 0 : index
    %26 = vector.load %arg5[%c0_11, %c0_12] : memref<32x1xf32, #tpu.memory_space<vmem>>, vector<32x1xf32>
    %27 = vector.broadcast %26 : vector<32x1xf32> to vector<32x384xf32>
    %28 = arith.addf %25, %27 : vector<32x384xf32>
    %29 = vector.extract_strided_slice %1 {offsets = [0, 25], sizes = [32, 384], strides = [1, 1]} : vector<32x512xf32> to vector<32x384xf32>
    %30 = arith.addf %28, %29 : vector<32x384xf32>
    %cst_13 = arith.constant 0.000000e+00 : f32
    %31 = vector.broadcast %cst_13 : f32 to vector<32x512xf32>
    %c0_14 = arith.constant 0 : index
    %c0_15 = arith.constant 0 : index
    %32 = vector.load %arg10[%c0_14, %c0_15] : memref<32x512xf32, #tpu.memory_space<vmem>>, vector<32x512xf32>
    tpu.vector_store %arg10[%c0_14, %c0_15], %31 {strides = array<i32>} : memref<32x512xf32, #tpu.memory_space<vmem>>, vector<32x512xf32>,
    %cst_16 = arith.constant 0.000000e+00 : f32
    %33 = vector.broadcast %cst_16 : f32 to vector<32x384xf32>
    %34 = arith.cmpf ogt, %30, %33 : vector<32x384xf32>
    %cst_17 = arith.constant 0.000000e+00 : f32
    %35 = vector.broadcast %cst_17 : f32 to vector<32x384xf32>
    %36 = arith.cmpf olt, %30, %35 : vector<32x384xf32>
    %cst_18 = arith.constant -1.000000e+00 : f32
    %cst_19 = arith.constant 0.000000e+00 : f32
    %37 = vector.broadcast %cst_18 : f32 to vector<32x384xf32>
    %38 = vector.broadcast %cst_19 : f32 to vector<32x384xf32>
    %39 = arith.select %36, %37, %38 : vector<32x384xi1>, vector<32x384xf32>
    %cst_20 = arith.constant 1.000000e+00 : f32
    %40 = vector.broadcast %cst_20 : f32 to vector<32x384xf32>
    %41 = arith.select %34, %40, %39 : vector<32x384xi1>, vector<32x384xf32>
    %c0_21 = arith.constant 0 : index
    %c0_22 = arith.constant 0 : index
    %42 = vector.load %arg2[%c0_21, %c0_22] : memref<1x384xf32, #tpu.memory_space<vmem>>, vector<1x384xf32>
    %43 = vector.broadcast %42 : vector<1x384xf32> to vector<32x384xf32>
    %44 = arith.mulf %41, %43 : vector<32x384xf32>
    %c0_23 = arith.constant 0 : index
    %c25 = arith.constant 25 : index
    %45 = vector.load %arg10[%c0_23, %c25] : memref<32x512xf32, #tpu.memory_space<vmem>>, vector<32x384xf32>
    tpu.vector_store %arg10[%c0_23, %c25], %44 {strides = array<i32>} : memref<32x512xf32, #tpu.memory_space<vmem>>, vector<32x384xf32>,
    %c0_24 = arith.constant 0 : index
    %c0_25 = arith.constant 0 : index
    %46 = vector.load %arg10[%c0_24, %c0_25] : memref<32x512xf32, #tpu.memory_space<vmem>>, vector<32x512xf32>
    %47 = vector.extract_strided_slice %46 {offsets = [0, 0], sizes = [32, 384], strides = [1, 1]} : vector<32x512xf32> to vector<32x384xf32>
    %48 = vector.extract_strided_slice %46 {offsets = [0, 1], sizes = [32, 384], strides = [1, 1]} : vector<32x512xf32> to vector<32x384xf32>
    %49 = vector.extract_strided_slice %46 {offsets = [0, 2], sizes = [32, 384], strides = [1, 1]} : vector<32x512xf32> to vector<32x384xf32>
    %50 = vector.extract_strided_slice %46 {offsets = [0, 24], sizes = [32, 384], strides = [1, 1]} : vector<32x512xf32> to vector<32x384xf32>
    %51 = vector.extract_strided_slice %46 {offsets = [0, 25], sizes = [32, 384], strides = [1, 1]} : vector<32x512xf32> to vector<32x384xf32>
    %52 = vector.extract_strided_slice %46 {offsets = [0, 26], sizes = [32, 384], strides = [1, 1]} : vector<32x512xf32> to vector<32x384xf32>
    %53 = vector.extract_strided_slice %46 {offsets = [0, 48], sizes = [32, 384], strides = [1, 1]} : vector<32x512xf32> to vector<32x384xf32>
    %54 = vector.extract_strided_slice %46 {offsets = [0, 49], sizes = [32, 384], strides = [1, 1]} : vector<32x512xf32> to vector<32x384xf32>
    %55 = vector.extract_strided_slice %46 {offsets = [0, 50], sizes = [32, 384], strides = [1, 1]} : vector<32x512xf32> to vector<32x384xf32>
    %56 = tpu.concatenate %47, %48, %49, %50, %51, %52, %53, %54, %55 in 0 : vector<32x384xf32>, vector<32x384xf32>, vector<32x384xf32>, vector<32x384xf32>, vector<32x384xf32>, vector<32x384xf32>, vector<32x384xf32>, vector<32x384xf32>, vector<32x384xf32> -> vector<288x384xf32>
    %c0_26 = arith.constant 0 : index
    %c0_27 = arith.constant 0 : index
    %57 = vector.load %arg6[%c0_26, %c0_27] : memref<32x288xf32, #tpu.memory_space<vmem>>, vector<32x288xf32>
    %cst_28 = arith.constant dense<0.000000e+00> : vector<32x384xf32>
    %58 = tpu.matmul %57, %56, %cst_28 {dimension_numbers = #tpu.dot_dimension_numbers<[1], [0], [0], [1], [0, 0, 1, 1], [], []>} : vector<32x288xf32>, vector<288x384xf32>, vector<32x384xf32> -> vector<32x384xf32>
    %c0_29 = arith.constant 0 : index
    %c0_30 = arith.constant 0 : index
    %59 = vector.load %arg7[%c0_29, %c0_30] : memref<32x1xf32, #tpu.memory_space<vmem>>, vector<32x1xf32>
    %60 = vector.broadcast %59 : vector<32x1xf32> to vector<32x384xf32>
    %61 = arith.mulf %58, %60 : vector<32x384xf32>
    %c0_31 = arith.constant 0 : index
    %c0_32 = arith.constant 0 : index
    %62 = vector.load %arg8[%c0_31, %c0_32] : memref<32x1xf32, #tpu.memory_space<vmem>>, vector<32x1xf32>
    %63 = vector.broadcast %62 : vector<32x1xf32> to vector<32x384xf32>
    %64 = arith.addf %61, %63 : vector<32x384xf32>
    %65 = arith.addf %64, %30 : vector<32x384xf32>
    %c0_33 = arith.constant 0 : index
    %c0_34 = arith.constant 0 : index
    %c0_35 = arith.constant 0 : index
    %66 = vector.load %arg9[%c0_33, %c0_34, %c0_35] : memref<1x32x384xf32, #tpu.memory_space<vmem>>, vector<1x32x384xf32>
    %67 = vector.shape_cast %66 : vector<1x32x384xf32> to vector<32x384xf32>
    %68 = vector.shape_cast %65 : vector<32x384xf32> to vector<1x32x384xf32>
    tpu.vector_store %arg9[%c0_33, %c0_34, %c0_35], %68 {strides = array<i32>} : memref<1x32x384xf32, #tpu.memory_space<vmem>>, vector<1x32x384xf32>,
    return
  }
  func.func @transform_0(%arg0: i32) -> (i32, i32, i32) {
    %c0_i32 = arith.constant 0 : i32
    %c0_i32_0 = arith.constant 0 : i32
    %c0_i32_1 = arith.constant 0 : i32
    return %arg0, %c0_i32, %c0_i32_0 : i32, i32, i32
  }
  func.func @transform_1(%arg0: i32) -> (i32, i32) {
    %c0_i32 = arith.constant 0 : i32
    %c0_i32_0 = arith.constant 0 : i32
    %c0_i32_1 = arith.constant 0 : i32
    return %c0_i32, %c0_i32_0 : i32, i32
  }
  func.func @transform_2(%arg0: i32) -> (i32, i32) {
    %c0_i32 = arith.constant 0 : i32
    %c0_i32_0 = arith.constant 0 : i32
    %c0_i32_1 = arith.constant 0 : i32
    return %c0_i32, %c0_i32_0 : i32, i32
  }
  func.func @transform_3(%arg0: i32) -> (i32, i32) {
    %c0_i32 = arith.constant 0 : i32
    %c0_i32_0 = arith.constant 0 : i32
    %c0_i32_1 = arith.constant 0 : i32
    return %c0_i32, %c0_i32_0 : i32, i32
  }
  func.func @transform_4(%arg0: i32) -> (i32, i32) {
    %c0_i32 = arith.constant 0 : i32
    %c0_i32_0 = arith.constant 0 : i32
    %c0_i32_1 = arith.constant 0 : i32
    return %c0_i32, %c0_i32_0 : i32, i32
  }
  func.func @transform_5(%arg0: i32) -> (i32, i32) {
    %c0_i32 = arith.constant 0 : i32
    %c0_i32_0 = arith.constant 0 : i32
    %c0_i32_1 = arith.constant 0 : i32
    return %c0_i32, %c0_i32_0 : i32, i32
  }
  func.func @transform_6(%arg0: i32) -> (i32, i32) {
    %c0_i32 = arith.constant 0 : i32
    %c0_i32_0 = arith.constant 0 : i32
    %c0_i32_1 = arith.constant 0 : i32
    return %c0_i32, %c0_i32_0 : i32, i32
  }
  func.func @transform_7(%arg0: i32) -> (i32, i32) {
    %c0_i32 = arith.constant 0 : i32
    %c0_i32_0 = arith.constant 0 : i32
    %c0_i32_1 = arith.constant 0 : i32
    return %c0_i32, %c0_i32_0 : i32, i32
  }
  func.func @transform_8(%arg0: i32) -> (i32, i32, i32) {
    %c0_i32 = arith.constant 0 : i32
    %c0_i32_0 = arith.constant 0 : i32
    %c0_i32_1 = arith.constant 0 : i32
    return %arg0, %c0_i32, %c0_i32_0 : i32, i32, i32
  }
}

</mosaic_0001>

<llo_original>
// kernel: bireal_basic_block_forward.1
$region0: #{bireal_basic_block_forward.1}
  #allocation0 [shape = 'u32[]', space=smem, size = 0x4, offset = 0x4, fixed_abs, tag = 'smem constant byte address 0x4 - core index']
  #allocation1 [shape = 'u32[72,128]{1,0:T(1,128)}', space=vmem, size = 0x9000, scoped, tag = 'internal scratch']
  #allocation2 [shape = 'f32[32,512]{1,0:T(8,128)}', space=vmem, size = 0x10000, scoped, tag = 'scratch operand']
  %s0 = inlined_call_operand.vmem [shape: f32[2,32,512], index: 0, kind: input, shape index: {}]
  %s1 = inlined_call_operand.vmem [shape: f32[1,384], index: 1, kind: input, shape index: {}]
  %s2 = inlined_call_operand.vmem [shape: f32[32,288], index: 2, kind: input, shape index: {}]
  %s3 = inlined_call_operand.vmem [shape: f32[32,1], index: 3, kind: input, shape index: {}]
  %s4 = inlined_call_operand.vmem [shape: f32[32,1], index: 4, kind: input, shape index: {}]
  %s5 = inlined_call_operand.vmem [shape: f32[32,288], index: 5, kind: input, shape index: {}]
  %s6 = inlined_call_operand.vmem [shape: f32[32,1], index: 6, kind: input, shape index: {}]
  %s7 = inlined_call_operand.vmem [shape: f32[32,1], index: 7, kind: input, shape index: {}]
  %s8 = inlined_call_operand.vmem [shape: f32[2,32,384], index: 8, kind: output, shape index: {}]
  %s9 = sld [smem:[#allocation0]]
  $region65: #{bireal_basic_block_forward.1} parent=0
    _
  %s11 = ssub.s32 1, %s9
  %s12 = scalar_select 0, %s11, %s9
  loop: start=0, step=1, limit=4
  $region2: #{bireal_basic_block_forward.1} parent=0 // loop_pre_header
    _
  $region3: #{bireal_basic_block_forward.1} parent=0 // loop_header
    %s14 = sphi 0, %s18
    %p15 = scmp.ge.s32.totalorder %s14, 4
    %s24 = sphi 0, %s26
    %s27 = sphi 0, %s24
    %s28 = sphi 0, %s27
    %s44 = sphi 0, %s28
    %s48 = sphi 0, %s48
    %s50 = sphi 0, %s48
    %s51 = sphi 0, %s50
    %s65 = sphi 0, %s51
    %s69 = sphi 0, %s69
    %s71 = sphi 0, %s69
    %s72 = sphi 0, %s71
    %s86 = sphi 0, %s72
    %s90 = sphi 0, %s90
    %s92 = sphi 0, %s90
    %s93 = sphi 0, %s92
    %s107 = sphi 0, %s93
    %s111 = sphi 0, %s111
    %s113 = sphi 0, %s111
    %s114 = sphi 0, %s113
    %s128 = sphi 0, %s114
    %s132 = sphi 0, %s132
    %s134 = sphi 0, %s132
    %s135 = sphi 0, %s134
    %s149 = sphi 0, %s135
    %s153 = sphi 0, %s153
    %s155 = sphi 0, %s153
    %s156 = sphi 0, %s155
    %s170 = sphi 0, %s156
    %s174 = sphi 0, %s174
    %s176 = sphi 0, %s174
    %s177 = sphi 0, %s176
    %s191 = sphi 0, %s177
    %s197 = sphi 0, %s199
    %s200 = sphi 0, %s197
    %s201 = sphi 0, %s200
    %s217 = sphi 0, %s201
  $region4: #{bireal_basic_block_forward.1} parent=0 // loop_header_branch
    %17 = sbr.rel (%p15) target = $region8
  $region5: #{bireal_basic_block_forward.1} parent=0 // loop_body
    %s19 = ssub.s32 %s14, 1
    %s20 = ssub.s32 %s14, 2
    %s21 = sadd.s32 %s14, 1
    %s22 = ssub.s32 %s14, %s21
    %p23 = scmp.eq.s32.totalorder %s22, 0
    %s25 = sadd.s32 %s24, 1
    %s26 = scalar_select %p23, %s24, %s25
    %p29 = pneg %p23
    %p30 = scmp.eq.s32.totalorder %s14, 1
    %p31 = por %p29, %p30
    %p32 = scmp.ne.s32.totalorder %s24, %s27
    %p33 = scmp.eq.s32.totalorder %s14, 0
    %p34 = por %p32, %p33
    %p35 = scmp.ne.s32.totalorder %s24, %s27
    %p36 = scmp.eq.s32.totalorder %s19, 1
    %p37 = por %p35, %p36
    %p38 = scmp.ne.s32.totalorder %s27, %s28
    %p39 = scmp.eq.s32.totalorder %s19, 0
    %p40 = por %p38, %p39
    %p41 = scmp.ne.s32.totalorder %s27, %s28
    %p42 = scmp.eq.s32.totalorder %s20, 1
    %p43 = por %p41, %p42
    %p45 = scmp.ne.s32.totalorder %s28, %s44
    %p46 = scmp.eq.s32.totalorder %s20, 0
    %p47 = por %p45, %p46
    %s49 = sadd.s32 %s48, 1
    %p52 = scmp.eq.s32.totalorder %s14, 1
    %p53 = scmp.ne.s32.totalorder %s48, %s50
    %p54 = scmp.eq.s32.totalorder %s14, 0
    %p55 = por %p53, %p54
    %p56 = scmp.ne.s32.totalorder %s48, %s50
    %p57 = scmp.eq.s32.totalorder %s19, 1
    %p58 = por %p56, %p57
    %p59 = scmp.ne.s32.totalorder %s50, %s51
    %p60 = scmp.eq.s32.totalorder %s19, 0
    %p61 = por %p59, %p60
    %p62 = scmp.ne.s32.totalorder %s50, %s51
    %p63 = scmp.eq.s32.totalorder %s20, 1
    %p64 = por %p62, %p63
    %p66 = scmp.ne.s32.totalorder %s51, %s65
    %p67 = scmp.eq.s32.totalorder %s20, 0
    %p68 = por %p66, %p67
    %s70 = sadd.s32 %s69, 1
    %p73 = scmp.eq.s32.totalorder %s14, 1
    %p74 = scmp.ne.s32.totalorder %s69, %s71
    %p75 = scmp.eq.s32.totalorder %s14, 0
    %p76 = por %p74, %p75
    %p77 = scmp.ne.s32.totalorder %s69, %s71
    %p78 = scmp.eq.s32.totalorder %s19, 1
    %p79 = por %p77, %p78
    %p80 = scmp.ne.s32.totalorder %s71, %s72
    %p81 = scmp.eq.s32.totalorder %s19, 0
    %p82 = por %p80, %p81
    %p83 = scmp.ne.s32.totalorder %s71, %s72
    %p84 = scmp.eq.s32.totalorder %s20, 1
    %p85 = por %p83, %p84
    %p87 = scmp.ne.s32.totalorder %s72, %s86
    %p88 = scmp.eq.s32.totalorder %s20, 0
    %p89 = por %p87, %p88
    %s91 = sadd.s32 %s90, 1
    %p94 = scmp.eq.s32.totalorder %s14, 1
    %p95 = scmp.ne.s32.totalorder %s90, %s92
    %p96 = scmp.eq.s32.totalorder %s14, 0
    %p97 = por %p95, %p96
    %p98 = scmp.ne.s32.totalorder %s90, %s92
    %p99 = scmp.eq.s32.totalorder %s19, 1
    %p100 = por %p98, %p99
    %p101 = scmp.ne.s32.totalorder %s92, %s93
    %p102 = scmp.eq.s32.totalorder %s19, 0
    %p103 = por %p101, %p102
    %p104 = scmp.ne.s32.totalorder %s92, %s93
    %p105 = scmp.eq.s32.totalorder %s20, 1
    %p106 = por %p104, %p105
    %p108 = scmp.ne.s32.totalorder %s93, %s107
    %p109 = scmp.eq.s32.totalorder %s20, 0
    %p110 = por %p108, %p109
    %s112 = sadd.s32 %s111, 1
    %p115 = scmp.eq.s32.totalorder %s14, 1
    %p116 = scmp.ne.s32.totalorder %s111, %s113
    %p117 = scmp.eq.s32.totalorder %s14, 0
    %p118 = por %p116, %p117
    %p119 = scmp.ne.s32.totalorder %s111, %s113
    %p120 = scmp.eq.s32.totalorder %s19, 1
    %p121 = por %p119, %p120
    %p122 = scmp.ne.s32.totalorder %s113, %s114
    %p123 = scmp.eq.s32.totalorder %s19, 0
    %p124 = por %p122, %p123
    %p125 = scmp.ne.s32.totalorder %s113, %s114
    %p126 = scmp.eq.s32.totalorder %s20, 1
    %p127 = por %p125, %p126
    %p129 = scmp.ne.s32.totalorder %s114, %s128
    %p130 = scmp.eq.s32.totalorder %s20, 0
    %p131 = por %p129, %p130
    %s133 = sadd.s32 %s132, 1
    %p136 = scmp.eq.s32.totalorder %s14, 1
    %p137 = scmp.ne.s32.totalorder %s132, %s134
    %p138 = scmp.eq.s32.totalorder %s14, 0
    %p139 = por %p137, %p138
    %p140 = scmp.ne.s32.totalorder %s132, %s134
    %p141 = scmp.eq.s32.totalorder %s19, 1
    %p142 = por %p140, %p141
    %p143 = scmp.ne.s32.totalorder %s134, %s135
    %p144 = scmp.eq.s32.totalorder %s19, 0
    %p145 = por %p143, %p144
    %p146 = scmp.ne.s32.totalorder %s134, %s135
    %p147 = scmp.eq.s32.totalorder %s20, 1
    %p148 = por %p146, %p147
    %p150 = scmp.ne.s32.totalorder %s135, %s149
    %p151 = scmp.eq.s32.totalorder %s20, 0
    %p152 = por %p150, %p151
    %s154 = sadd.s32 %s153, 1
    %p157 = scmp.eq.s32.totalorder %s14, 1
    %p158 = scmp.ne.s32.totalorder %s153, %s155
    %p159 = scmp.eq.s32.totalorder %s14, 0
    %p160 = por %p158, %p159
    %p161 = scmp.ne.s32.totalorder %s153, %s155
    %p162 = scmp.eq.s32.totalorder %s19, 1
    %p163 = por %p161, %p162
    %p164 = scmp.ne.s32.totalorder %s155, %s156
    %p165 = scmp.eq.s32.totalorder %s19, 0
    %p166 = por %p164, %p165
    %p167 = scmp.ne.s32.totalorder %s155, %s156
    %p168 = scmp.eq.s32.totalorder %s20, 1
    %p169 = por %p167, %p168
    %p171 = scmp.ne.s32.totalorder %s156, %s170
    %p172 = scmp.eq.s32.totalorder %s20, 0
    %p173 = por %p171, %p172
    %s175 = sadd.s32 %s174, 1
    %p178 = scmp.eq.s32.totalorder %s14, 1
    %p179 = scmp.ne.s32.totalorder %s174, %s176
    %p180 = scmp.eq.s32.totalorder %s14, 0
    %p181 = por %p179, %p180
    %p182 = scmp.ne.s32.totalorder %s174, %s176
    %p183 = scmp.eq.s32.totalorder %s19, 1
    %p184 = por %p182, %p183
    %p185 = scmp.ne.s32.totalorder %s176, %s177
    %p186 = scmp.eq.s32.totalorder %s19, 0
    %p187 = por %p185, %p186
    %p188 = scmp.ne.s32.totalorder %s176, %s177
    %p189 = scmp.eq.s32.totalorder %s20, 1
    %p190 = por %p188, %p189
    %p192 = scmp.ne.s32.totalorder %s177, %s191
    %p193 = scmp.eq.s32.totalorder %s20, 0
    %p194 = por %p192, %p193
    %s195 = ssub.s32 %s14, %s21
    %p196 = scmp.eq.s32.totalorder %s195, 0
    %s198 = sadd.s32 %s197, 1
    %s199 = scalar_select %p196, %s197, %s198
    %p202 = pneg %p196
    %p203 = scmp.eq.s32.totalorder %s14, 1
    %p204 = por %p202, %p203
    %p205 = scmp.ne.s32.totalorder %s197, %s200
    %p206 = scmp.eq.s32.totalorder %s14, 0
    %p207 = por %p205, %p206
    %p208 = scmp.ne.s32.totalorder %s197, %s200
    %p209 = scmp.eq.s32.totalorder %s19, 1
    %p210 = por %p208, %p209
    %p211 = scmp.ne.s32.totalorder %s200, %s201
    %p212 = scmp.eq.s32.totalorder %s19, 0
    %p213 = por %p211, %p212
    %p214 = scmp.ne.s32.totalorder %s200, %s201
    %p215 = scmp.eq.s32.totalorder %s20, 1
    %p216 = por %p214, %p215
    %p218 = scmp.ne.s32.totalorder %s201, %s217
    %p219 = scmp.eq.s32.totalorder %s20, 0
    %p220 = por %p218, %p219
    %p221 = scmp.le.s32.totalorder 1, %s14
    %p222 = scmp.lt.s32.totalorder %s14, 3
    %p223 = pnand %p221, %p222
    %p224 = pneg %p223
    // Predicated region
    $region9: #{bireal_basic_block_forward.1} parent=5 // pred_check
      _
    $region10: #{bireal_basic_block_forward.1} parent=5 // pred_check_branch
      %226 = sbr.rel (%p223) target = $region12
    $region11: #{bireal_basic_block_forward.1} parent=5 // pred_region
      %s227 = ssub.s32 %s14, 1
      // Predicated region
      $region13: #{bireal_basic_block_forward.1} parent=11 // pred_check
        %p228 = pneg %p61
      $region14: #{bireal_basic_block_forward.1} parent=11 // pred_check_branch
        %230 = sbr.rel (%p228) target = $region16
      $region15: #{bireal_basic_block_forward.1} parent=11 // pred_region
        _
      $region16: #{bireal_basic_block_forward.1} parent=11 // pred_fallthru
        _
      // Predicated region
      $region17: #{bireal_basic_block_forward.1} parent=11 // pred_check
        %p231 = pneg %p82
      $region18: #{bireal_basic_block_forward.1} parent=11 // pred_check_branch
        %233 = sbr.rel (%p231) target = $region20
      $region19: #{bireal_basic_block_forward.1} parent=11 // pred_region
        _
      $region20: #{bireal_basic_block_forward.1} parent=11 // pred_fallthru
        _
      // Predicated region
      $region21: #{bireal_basic_block_forward.1} parent=11 // pred_check
        %p234 = pneg %p103
      $region22: #{bireal_basic_block_forward.1} parent=11 // pred_check_branch
        %236 = sbr.rel (%p234) target = $region24
      $region23: #{bireal_basic_block_forward.1} parent=11 // pred_region
        _
      $region24: #{bireal_basic_block_forward.1} parent=11 // pred_fallthru
        _
      // Predicated region
      $region25: #{bireal_basic_block_forward.1} parent=11 // pred_check
        %p237 = pneg %p124
      $region26: #{bireal_basic_block_forward.1} parent=11 // pred_check_branch
        %239 = sbr.rel (%p237) target = $region28
      $region27: #{bireal_basic_block_forward.1} parent=11 // pred_region
        _
      $region28: #{bireal_basic_block_forward.1} parent=11 // pred_fallthru
        _
      // Predicated region
      $region29: #{bireal_basic_block_forward.1} parent=11 // pred_check
        %p240 = pneg %p145
      $region30: #{bireal_basic_block_forward.1} parent=11 // pred_check_branch
        %242 = sbr.rel (%p240) target = $region32
      $region31: #{bireal_basic_block_forward.1} parent=11 // pred_region
        _
      $region32: #{bireal_basic_block_forward.1} parent=11 // pred_fallthru
        _
      // Predicated region
      $region33: #{bireal_basic_block_forward.1} parent=11 // pred_check
        %p243 = pneg %p166
      $region34: #{bireal_basic_block_forward.1} parent=11 // pred_check_branch
        %245 = sbr.rel (%p243) target = $region36
      $region35: #{bireal_basic_block_forward.1} parent=11 // pred_region
        _
      $region36: #{bireal_basic_block_forward.1} parent=11 // pred_fallthru
        _
      // Predicated region
      $region37: #{bireal_basic_block_forward.1} parent=11 // pred_check
        %p246 = pneg %p187
      $region38: #{bireal_basic_block_forward.1} parent=11 // pred_check_branch
        %248 = sbr.rel (%p246) target = $region40
      $region39: #{bireal_basic_block_forward.1} parent=11 // pred_region
        _
      $region40: #{bireal_basic_block_forward.1} parent=11 // pred_fallthru
        _
    $region12: #{bireal_basic_block_forward.1} parent=5 // pred_fallthru
      _
    %p249 = scmp.lt.s32.totalorder %s14, 2
    // Predicated region
    $region41: #{bireal_basic_block_forward.1} parent=5 // pred_check
      %p250 = pneg %p249
    $region42: #{bireal_basic_block_forward.1} parent=5 // pred_check_branch
      %252 = sbr.rel (%p250) target = $region44
    $region43: #{bireal_basic_block_forward.1} parent=5 // pred_region
      // Predicated region
      $region45: #{bireal_basic_block_forward.1} parent=43 // pred_check
        %p253 = pneg %p34
      $region46: #{bireal_basic_block_forward.1} parent=43 // pred_check_branch
        %255 = sbr.rel (%p253) target = $region48
      $region47: #{bireal_basic_block_forward.1} parent=43 // pred_region
        %p256 = scmp.lt.s32.totalorder %s14, 1
        %s257 = scalar_select %p256, %s14, 1
        %s258 = smul.addr %s257, 16
        %s259 = smul.addr %s258, 8
        %s260 = scalar_lea.vmem %s0, %s259
      $region48: #{bireal_basic_block_forward.1} parent=43 // pred_fallthru
        _
    $region44: #{bireal_basic_block_forward.1} parent=5 // pred_fallthru
      _
    %p261 = scmp.le.s32.totalorder 1, %s14
    %p262 = scmp.lt.s32.totalorder %s14, 3
    %p263 = pnand %p261, %p262
    %p264 = pneg %p263
    // Predicated region
    $region49: #{bireal_basic_block_forward.1} parent=5 // pred_check
      _
    $region50: #{bireal_basic_block_forward.1} parent=5 // pred_check_branch
      %266 = sbr.rel (%p263) target = $region52
    $region51: #{bireal_basic_block_forward.1} parent=5 // pred_region
      %s267 = ssub.s32 %s14, 1
      %p268 = scmp.lt.s32.totalorder %s19, 1
      %s269 = scalar_select %p268, %s19, 1
      %s270 = smul.addr %s269, 16
      %s271 = smul.addr %s270, 8
      %s272 = scalar_lea.vmem %s0, %s271
      %p273 = pneg %p40
      %p274 = pneg %p37
      %p275 = pneg %p61
      %p276 = pneg %p58
      %p277 = pneg %p82
      %p278 = pneg %p79
      %p279 = pneg %p103
      %p280 = pneg %p100
      %p281 = pneg %p124
      %p282 = pneg %p121
      %p283 = pneg %p145
      %p284 = pneg %p142
      %p285 = pneg %p166
      %p286 = pneg %p163
      %p287 = pneg %p187
      %p288 = pneg %p184
      %p289 = pneg %p213
      %p290 = pneg %p210
      %p291 = scmp.lt.s32.totalorder %s19, 1
      %s292 = scalar_select %p291, %s19, 1
      %s293 = smul.addr %s292, 12
      %s294 = smul.addr %s293, 8
      %s295 = scalar_lea.vmem %s8, %s294
      %p296 = scmp.lt.s32.totalorder %s19, 1
      %s297 = scalar_select %p296, %s19, 1
      %s298 = smul.addr %s297, 16
      %s299 = smul.addr %s298, 8
      %s300 = scalar_lea.vmem %s0, %s299
      %p301 = scmp.lt.s32.totalorder %s19, 1
      %s302 = scalar_select %p301, %s19, 1
      %s303 = smul.addr %s302, 12
      %s304 = smul.addr %s303, 8
      %s305 = scalar_lea.vmem %s8, %s304
      %v306 = vld [vmem:[%s300] sm:$0xff]
      %v307 = vld [vmem:[%s300 + $0x8] sm:$0xff]
      %v308 = vld [vmem:[%s300 + $0x10] sm:$0xff]
      %v309 = vld [vmem:[%s300 + $0x18] sm:$0xff]
      %v310 = vld [vmem:[%s300 + $0x20] sm:$0xff]
      %v311 = vld [vmem:[%s300 + $0x28] sm:$0xff]
      %v312 = vld [vmem:[%s300 + $0x30] sm:$0xff]
      %v313 = vld [vmem:[%s300 + $0x38] sm:$0xff]
      %v314 = vld [vmem:[%s300 + $0x40] sm:$0xff]
      %v315 = vld [vmem:[%s300 + $0x48] sm:$0xff]
      %v316 = vld [vmem:[%s300 + $0x50] sm:$0xff]
      %v317 = vld [vmem:[%s300 + $0x58] sm:$0xff]
      %v318 = vld [vmem:[%s300 + $0x60] sm:$0xff]
      %v319 = vld [vmem:[%s300 + $0x68] sm:$0xff]
      %v320 = vld [vmem:[%s300 + $0x70] sm:$0xff]
      %v321 = vld [vmem:[%s300 + $0x78] sm:$0xff]
      %vm322 = vcmp.gt.f32.partialorder %v306, 0.0
      %vm323 = vcmp.gt.f32.partialorder %v307, 0.0
      %vm324 = vcmp.gt.f32.partialorder %v308, 0.0
      %vm325 = vcmp.gt.f32.partialorder %v309, 0.0
      %vm326 = vcmp.gt.f32.partialorder %v310, 0.0
      %vm327 = vcmp.gt.f32.partialorder %v311, 0.0
      %vm328 = vcmp.gt.f32.partialorder %v312, 0.0
      %vm329 = vcmp.gt.f32.partialorder %v313, 0.0
      %vm330 = vcmp.gt.f32.partialorder %v314, 0.0
      %vm331 = vcmp.gt.f32.partialorder %v315, 0.0
      %vm332 = vcmp.gt.f32.partialorder %v316, 0.0
      %vm333 = vcmp.gt.f32.partialorder %v317, 0.0
      %vm334 = vcmp.gt.f32.partialorder %v318, 0.0
      %vm335 = vcmp.gt.f32.partialorder %v319, 0.0
      %vm336 = vcmp.gt.f32.partialorder %v320, 0.0
      %vm337 = vcmp.gt.f32.partialorder %v321, 0.0
      %vm338 = vcmp.lt.f32.partialorder %v306, 0.0
      %vm339 = vcmp.lt.f32.partialorder %v307, 0.0
      %vm340 = vcmp.lt.f32.partialorder %v308, 0.0
      %vm341 = vcmp.lt.f32.partialorder %v309, 0.0
      %vm342 = vcmp.lt.f32.partialorder %v310, 0.0
      %vm343 = vcmp.lt.f32.partialorder %v311, 0.0
      %vm344 = vcmp.lt.f32.partialorder %v312, 0.0
      %vm345 = vcmp.lt.f32.partialorder %v313, 0.0
      %vm346 = vcmp.lt.f32.partialorder %v314, 0.0
      %vm347 = vcmp.lt.f32.partialorder %v315, 0.0
      %vm348 = vcmp.lt.f32.partialorder %v316, 0.0
      %vm349 = vcmp.lt.f32.partialorder %v317, 0.0
      %vm350 = vcmp.lt.f32.partialorder %v318, 0.0
      %vm351 = vcmp.lt.f32.partialorder %v319, 0.0
      %vm352 = vcmp.lt.f32.partialorder %v320, 0.0
      %vm353 = vcmp.lt.f32.partialorder %v321, 0.0
      %v354 = vsel %vm338, -1.0, 0.0
      %v355 = vsel %vm339, -1.0, 0.0
      %v356 = vsel %vm340, -1.0, 0.0
      %v357 = vsel %vm341, -1.0, 0.0
      %v358 = vsel %vm342, -1.0, 0.0
      %v359 = vsel %vm343, -1.0, 0.0
      %v360 = vsel %vm344, -1.0, 0.0
      %v361 = vsel %vm345, -1.0, 0.0
      %v362 = vsel %vm346, -1.0, 0.0
      %v363 = vsel %vm347, -1.0, 0.0
      %v364 = vsel %vm348, -1.0, 0.0
      %v365 = vsel %vm349, -1.0, 0.0
      %v366 = vsel %vm350, -1.0, 0.0
      %v367 = vsel %vm351, -1.0, 0.0
      %v368 = vsel %vm352, -1.0, 0.0
      %v369 = vsel %vm353, -1.0, 0.0
      %v370 = vsel %vm322, 1.0, %v354
      %v371 = vsel %vm323, 1.0, %v355
      %v372 = vsel %vm324, 1.0, %v356
      %v373 = vsel %vm325, 1.0, %v357
      %v374 = vsel %vm326, 1.0, %v358
      %v375 = vsel %vm327, 1.0, %v359
      %v376 = vsel %vm328, 1.0, %v360
      %v377 = vsel %vm329, 1.0, %v361
      %v378 = vsel %vm330, 1.0, %v362
      %v379 = vsel %vm331, 1.0, %v363
      %v380 = vsel %vm332, 1.0, %v364
      %v381 = vsel %vm333, 1.0, %v365
      %v382 = vsel %vm334, 1.0, %v366
      %v383 = vsel %vm335, 1.0, %v367
      %v384 = vsel %vm336, 1.0, %v368
      %v385 = vsel %vm337, 1.0, %v369
      %402 = vrot.lane.b32.xlu0 %v370, 127
      %v403 = vpop.permute.xlu0 %402
      %404 = vrot.lane.b32.xlu0 %v371, 127
      %v405 = vpop.permute.xlu0 %404
      %406 = vrot.lane.b32.xlu0 %v372, 127
      %v407 = vpop.permute.xlu0 %406
      %408 = vrot.lane.b32.xlu0 %v373, 127
      %v409 = vpop.permute.xlu0 %408
      %410 = vrot.lane.b32.xlu0 %v374, 127
      %v411 = vpop.permute.xlu0 %410
      %412 = vrot.lane.b32.xlu0 %v375, 127
      %v413 = vpop.permute.xlu0 %412
      %414 = vrot.lane.b32.xlu0 %v376, 127
      %v415 = vpop.permute.xlu0 %414
      %416 = vrot.lane.b32.xlu0 %v377, 127
      %v417 = vpop.permute.xlu0 %416
      %418 = vrot.lane.b32.xlu0 %v378, 127
      %v419 = vpop.permute.xlu0 %418
      %420 = vrot.lane.b32.xlu0 %v379, 127
      %v421 = vpop.permute.xlu0 %420
      %422 = vrot.lane.b32.xlu0 %v380, 127
      %v423 = vpop.permute.xlu0 %422
      %424 = vrot.lane.b32.xlu0 %v381, 127
      %v425 = vpop.permute.xlu0 %424
      %426 = vrot.lane.b32.xlu0 %v382, 127
      %v427 = vpop.permute.xlu0 %426
      %428 = vrot.lane.b32.xlu0 %v383, 127
      %v429 = vpop.permute.xlu0 %428
      %430 = vrot.lane.b32.xlu0 %v384, 127
      %v431 = vpop.permute.xlu0 %430
      %432 = vrot.lane.b32.xlu0 %v385, 127
      %v433 = vpop.permute.xlu0 %432
      %vm434 = vcmask 1039360
      %v435 = vsel %vm434, %v403, %v405
      %v436 = vsel %vm434, %v405, %v407
      %v437 = vsel %vm434, %v407, %v409
      %v438 = vsel %vm434, %v411, %v413
      %v439 = vsel %vm434, %v413, %v415
      %v440 = vsel %vm434, %v415, %v417
      %v441 = vsel %vm434, %v419, %v421
      %v442 = vsel %vm434, %v421, %v423
      %v443 = vsel %vm434, %v423, %v425
      %v444 = vsel %vm434, %v427, %v429
      %v445 = vsel %vm434, %v429, %v431
      %v446 = vsel %vm434, %v431, %v433
      %459 = vrot.lane.b32.xlu0 %v370, 126
      %v460 = vpop.permute.xlu0 %459
      %461 = vrot.lane.b32.xlu0 %v371, 126
      %v462 = vpop.permute.xlu0 %461
      %463 = vrot.lane.b32.xlu0 %v372, 126
      %v464 = vpop.permute.xlu0 %463
      %465 = vrot.lane.b32.xlu0 %v373, 126
      %v466 = vpop.permute.xlu0 %465
      %467 = vrot.lane.b32.xlu0 %v374, 126
      %v468 = vpop.permute.xlu0 %467
      %469 = vrot.lane.b32.xlu0 %v375, 126
      %v470 = vpop.permute.xlu0 %469
      %471 = vrot.lane.b32.xlu0 %v376, 126
      %v472 = vpop.permute.xlu0 %471
      %473 = vrot.lane.b32.xlu0 %v377, 126
      %v474 = vpop.permute.xlu0 %473
      %475 = vrot.lane.b32.xlu0 %v378, 126
      %v476 = vpop.permute.xlu0 %475
      %477 = vrot.lane.b32.xlu0 %v379, 126
      %v478 = vpop.permute.xlu0 %477
      %479 = vrot.lane.b32.xlu0 %v380, 126
      %v480 = vpop.permute.xlu0 %479
      %481 = vrot.lane.b32.xlu0 %v381, 126
      %v482 = vpop.permute.xlu0 %481
      %483 = vrot.lane.b32.xlu0 %v382, 126
      %v484 = vpop.permute.xlu0 %483
      %485 = vrot.lane.b32.xlu0 %v383, 126
      %v486 = vpop.permute.xlu0 %485
      %487 = vrot.lane.b32.xlu0 %v384, 126
      %v488 = vpop.permute.xlu0 %487
      %489 = vrot.lane.b32.xlu0 %v385, 126
      %v490 = vpop.permute.xlu0 %489
      %vm491 = vcmask 1031168
      %v492 = vsel %vm491, %v460, %v462
      %v493 = vsel %vm491, %v462, %v464
      %v494 = vsel %vm491, %v464, %v466
      %v495 = vsel %vm491, %v468, %v470
      %v496 = vsel %vm491, %v470, %v472
      %v497 = vsel %vm491, %v472, %v474
      %v498 = vsel %vm491, %v476, %v478
      %v499 = vsel %vm491, %v478, %v480
      %v500 = vsel %vm491, %v480, %v482
      %v501 = vsel %vm491, %v484, %v486
      %v502 = vsel %vm491, %v486, %v488
      %v503 = vsel %vm491, %v488, %v490
      %516 = vrot.lane.b32.xlu0 %v370, 104
      %v517 = vpop.permute.xlu0 %516
      %518 = vrot.lane.b32.xlu0 %v371, 104
      %v519 = vpop.permute.xlu0 %518
      %520 = vrot.lane.b32.xlu0 %v372, 104
      %v521 = vpop.permute.xlu0 %520
      %522 = vrot.lane.b32.xlu0 %v373, 104
      %v523 = vpop.permute.xlu0 %522
      %524 = vrot.lane.b32.xlu0 %v374, 104
      %v525 = vpop.permute.xlu0 %524
      %526 = vrot.lane.b32.xlu0 %v375, 104
      %v527 = vpop.permute.xlu0 %526
      %528 = vrot.lane.b32.xlu0 %v376, 104
      %v529 = vpop.permute.xlu0 %528
      %530 = vrot.lane.b32.xlu0 %v377, 104
      %v531 = vpop.permute.xlu0 %530
      %532 = vrot.lane.b32.xlu0 %v378, 104
      %v533 = vpop.permute.xlu0 %532
      %534 = vrot.lane.b32.xlu0 %v379, 104
      %v535 = vpop.permute.xlu0 %534
      %536 = vrot.lane.b32.xlu0 %v380, 104
      %v537 = vpop.permute.xlu0 %536
      %538 = vrot.lane.b32.xlu0 %v381, 104
      %v539 = vpop.permute.xlu0 %538
      %540 = vrot.lane.b32.xlu0 %v382, 104
      %v541 = vpop.permute.xlu0 %540
      %542 = vrot.lane.b32.xlu0 %v383, 104
      %v543 = vpop.permute.xlu0 %542
      %544 = vrot.lane.b32.xlu0 %v384, 104
      %v545 = vpop.permute.xlu0 %544
      %546 = vrot.lane.b32.xlu0 %v385, 104
      %v547 = vpop.permute.xlu0 %546
      %vm548 = vcmask 850944
      %v549 = vsel %vm548, %v517, %v519
      %v550 = vsel %vm548, %v519, %v521
      %v551 = vsel %vm548, %v521, %v523
      %v552 = vsel %vm548, %v525, %v527
      %v553 = vsel %vm548, %v527, %v529
      %v554 = vsel %vm548, %v529, %v531
      %v555 = vsel %vm548, %v533, %v535
      %v556 = vsel %vm548, %v535, %v537
      %v557 = vsel %vm548, %v537, %v539
      %v558 = vsel %vm548, %v541, %v543
      %v559 = vsel %vm548, %v543, %v545
      %v560 = vsel %vm548, %v545, %v547
      %573 = vrot.lane.b32.xlu0 %v370, 103
      %v574 = vpop.permute.xlu0 %573
      %575 = vrot.lane.b32.xlu0 %v371, 103
      %v576 = vpop.permute.xlu0 %575
      %577 = vrot.lane.b32.xlu0 %v372, 103
      %v578 = vpop.permute.xlu0 %577
      %579 = vrot.lane.b32.xlu0 %v373, 103
      %v580 = vpop.permute.xlu0 %579
      %581 = vrot.lane.b32.xlu0 %v374, 103
      %v582 = vpop.permute.xlu0 %581
      %583 = vrot.lane.b32.xlu0 %v375, 103
      %v584 = vpop.permute.xlu0 %583
      %585 = vrot.lane.b32.xlu0 %v376, 103
      %v586 = vpop.permute.xlu0 %585
      %587 = vrot.lane.b32.xlu0 %v377, 103
      %v588 = vpop.permute.xlu0 %587
      %589 = vrot.lane.b32.xlu0 %v378, 103
      %v590 = vpop.permute.xlu0 %589
      %591 = vrot.lane.b32.xlu0 %v379, 103
      %v592 = vpop.permute.xlu0 %591
      %593 = vrot.lane.b32.xlu0 %v380, 103
      %v594 = vpop.permute.xlu0 %593
      %595 = vrot.lane.b32.xlu0 %v381, 103
      %v596 = vpop.permute.xlu0 %595
      %597 = vrot.lane.b32.xlu0 %v382, 103
      %v598 = vpop.permute.xlu0 %597
      %599 = vrot.lane.b32.xlu0 %v383, 103
      %v600 = vpop.permute.xlu0 %599
      %601 = vrot.lane.b32.xlu0 %v384, 103
      %v602 = vpop.permute.xlu0 %601
      %603 = vrot.lane.b32.xlu0 %v385, 103
      %v604 = vpop.permute.xlu0 %603
      %vm605 = vcmask 842752
      %v606 = vsel %vm605, %v574, %v576
      %v607 = vsel %vm605, %v576, %v578
      %v608 = vsel %vm605, %v578, %v580
      %v609 = vsel %vm605, %v582, %v584
      %v610 = vsel %vm605, %v584, %v586
      %v611 = vsel %vm605, %v586, %v588
      %v612 = vsel %vm605, %v590, %v592
      %v613 = vsel %vm605, %v592, %v594
      %v614 = vsel %vm605, %v594, %v596
      %v615 = vsel %vm605, %v598, %v600
      %v616 = vsel %vm605, %v600, %v602
      %v617 = vsel %vm605, %v602, %v604
      %630 = vrot.lane.b32.xlu0 %v370, 102
      %v631 = vpop.permute.xlu0 %630
      %632 = vrot.lane.b32.xlu0 %v371, 102
      %v633 = vpop.permute.xlu0 %632
      %634 = vrot.lane.b32.xlu0 %v372, 102
      %v635 = vpop.permute.xlu0 %634
      %636 = vrot.lane.b32.xlu0 %v373, 102
      %v637 = vpop.permute.xlu0 %636
      %638 = vrot.lane.b32.xlu0 %v374, 102
      %v639 = vpop.permute.xlu0 %638
      %640 = vrot.lane.b32.xlu0 %v375, 102
      %v641 = vpop.permute.xlu0 %640
      %642 = vrot.lane.b32.xlu0 %v376, 102
      %v643 = vpop.permute.xlu0 %642
      %644 = vrot.lane.b32.xlu0 %v377, 102
      %v645 = vpop.permute.xlu0 %644
      %646 = vrot.lane.b32.xlu0 %v378, 102
      %v647 = vpop.permute.xlu0 %646
      %648 = vrot.lane.b32.xlu0 %v379, 102
      %v649 = vpop.permute.xlu0 %648
      %650 = vrot.lane.b32.xlu0 %v380, 102
      %v651 = vpop.permute.xlu0 %650
      %652 = vrot.lane.b32.xlu0 %v381, 102
      %v653 = vpop.permute.xlu0 %652
      %654 = vrot.lane.b32.xlu0 %v382, 102
      %v655 = vpop.permute.xlu0 %654
      %656 = vrot.lane.b32.xlu0 %v383, 102
      %v657 = vpop.permute.xlu0 %656
      %658 = vrot.lane.b32.xlu0 %v384, 102
      %v659 = vpop.permute.xlu0 %658
      %660 = vrot.lane.b32.xlu0 %v385, 102
      %v661 = vpop.permute.xlu0 %660
      %vm662 = vcmask 834560
      %v663 = vsel %vm662, %v631, %v633
      %v664 = vsel %vm662, %v633, %v635
      %v665 = vsel %vm662, %v635, %v637
      %v666 = vsel %vm662, %v639, %v641
      %v667 = vsel %vm662, %v641, %v643
      %v668 = vsel %vm662, %v643, %v645
      %v669 = vsel %vm662, %v647, %v649
      %v670 = vsel %vm662, %v649, %v651
      %v671 = vsel %vm662, %v651, %v653
      %v672 = vsel %vm662, %v655, %v657
      %v673 = vsel %vm662, %v657, %v659
      %v674 = vsel %vm662, %v659, %v661
      %687 = vrot.lane.b32.xlu0 %v370, 80
      %v688 = vpop.permute.xlu0 %687
      %689 = vrot.lane.b32.xlu0 %v371, 80
      %v690 = vpop.permute.xlu0 %689
      %691 = vrot.lane.b32.xlu0 %v372, 80
      %v692 = vpop.permute.xlu0 %691
      %693 = vrot.lane.b32.xlu0 %v373, 80
      %v694 = vpop.permute.xlu0 %693
      %695 = vrot.lane.b32.xlu0 %v374, 80
      %v696 = vpop.permute.xlu0 %695
      %697 = vrot.lane.b32.xlu0 %v375, 80
      %v698 = vpop.permute.xlu0 %697
      %699 = vrot.lane.b32.xlu0 %v376, 80
      %v700 = vpop.permute.xlu0 %699
      %701 = vrot.lane.b32.xlu0 %v377, 80
      %v702 = vpop.permute.xlu0 %701
      %703 = vrot.lane.b32.xlu0 %v378, 80
      %v704 = vpop.permute.xlu0 %703
      %705 = vrot.lane.b32.xlu0 %v379, 80
      %v706 = vpop.permute.xlu0 %705
      %707 = vrot.lane.b32.xlu0 %v380, 80
      %v708 = vpop.permute.xlu0 %707
      %709 = vrot.lane.b32.xlu0 %v381, 80
      %v710 = vpop.permute.xlu0 %709
      %711 = vrot.lane.b32.xlu0 %v382, 80
      %v712 = vpop.permute.xlu0 %711
      %713 = vrot.lane.b32.xlu0 %v383, 80
      %v714 = vpop.permute.xlu0 %713
      %715 = vrot.lane.b32.xlu0 %v384, 80
      %v716 = vpop.permute.xlu0 %715
      %717 = vrot.lane.b32.xlu0 %v385, 80
      %v718 = vpop.permute.xlu0 %717
      %vm719 = vcmask 654336
      %v720 = vsel %vm719, %v688, %v690
      %v721 = vsel %vm719, %v690, %v692
      %v722 = vsel %vm719, %v692, %v694
      %v723 = vsel %vm719, %v696, %v698
      %v724 = vsel %vm719, %v698, %v700
      %v725 = vsel %vm719, %v700, %v702
      %v726 = vsel %vm719, %v704, %v706
      %v727 = vsel %vm719, %v706, %v708
      %v728 = vsel %vm719, %v708, %v710
      %v729 = vsel %vm719, %v712, %v714
      %v730 = vsel %vm719, %v714, %v716
      %v731 = vsel %vm719, %v716, %v718
      %744 = vrot.lane.b32.xlu0 %v370, 79
      %v745 = vpop.permute.xlu0 %744
      %746 = vrot.lane.b32.xlu0 %v371, 79
      %v747 = vpop.permute.xlu0 %746
      %748 = vrot.lane.b32.xlu0 %v372, 79
      %v749 = vpop.permute.xlu0 %748
      %750 = vrot.lane.b32.xlu0 %v373, 79
      %v751 = vpop.permute.xlu0 %750
      %752 = vrot.lane.b32.xlu0 %v374, 79
      %v753 = vpop.permute.xlu0 %752
      %754 = vrot.lane.b32.xlu0 %v375, 79
      %v755 = vpop.permute.xlu0 %754
      %756 = vrot.lane.b32.xlu0 %v376, 79
      %v757 = vpop.permute.xlu0 %756
      %758 = vrot.lane.b32.xlu0 %v377, 79
      %v759 = vpop.permute.xlu0 %758
      %760 = vrot.lane.b32.xlu0 %v378, 79
      %v761 = vpop.permute.xlu0 %760
      %762 = vrot.lane.b32.xlu0 %v379, 79
      %v763 = vpop.permute.xlu0 %762
      %764 = vrot.lane.b32.xlu0 %v380, 79
      %v765 = vpop.permute.xlu0 %764
      %766 = vrot.lane.b32.xlu0 %v381, 79
      %v767 = vpop.permute.xlu0 %766
      %768 = vrot.lane.b32.xlu0 %v382, 79
      %v769 = vpop.permute.xlu0 %768
      %770 = vrot.lane.b32.xlu0 %v383, 79
      %v771 = vpop.permute.xlu0 %770
      %772 = vrot.lane.b32.xlu0 %v384, 79
      %v773 = vpop.permute.xlu0 %772
      %774 = vrot.lane.b32.xlu0 %v385, 79
      %v775 = vpop.permute.xlu0 %774
      %vm776 = vcmask 646144
      %v777 = vsel %vm776, %v745, %v747
      %v778 = vsel %vm776, %v747, %v749
      %v779 = vsel %vm776, %v749, %v751
      %v780 = vsel %vm776, %v753, %v755
      %v781 = vsel %vm776, %v755, %v757
      %v782 = vsel %vm776, %v757, %v759
      %v783 = vsel %vm776, %v761, %v763
      %v784 = vsel %vm776, %v763, %v765
      %v785 = vsel %vm776, %v765, %v767
      %v786 = vsel %vm776, %v769, %v771
      %v787 = vsel %vm776, %v771, %v773
      %v788 = vsel %vm776, %v773, %v775
      %801 = vrot.lane.b32.xlu0 %v370, 78
      %v802 = vpop.permute.xlu0 %801
      %803 = vrot.lane.b32.xlu0 %v371, 78
      %v804 = vpop.permute.xlu0 %803
      %805 = vrot.lane.b32.xlu0 %v372, 78
      %v806 = vpop.permute.xlu0 %805
      %807 = vrot.lane.b32.xlu0 %v373, 78
      %v808 = vpop.permute.xlu0 %807
      %809 = vrot.lane.b32.xlu0 %v374, 78
      %v810 = vpop.permute.xlu0 %809
      %811 = vrot.lane.b32.xlu0 %v375, 78
      %v812 = vpop.permute.xlu0 %811
      %813 = vrot.lane.b32.xlu0 %v376, 78
      %v814 = vpop.permute.xlu0 %813
      %815 = vrot.lane.b32.xlu0 %v377, 78
      %v816 = vpop.permute.xlu0 %815
      %817 = vrot.lane.b32.xlu0 %v378, 78
      %v818 = vpop.permute.xlu0 %817
      %819 = vrot.lane.b32.xlu0 %v379, 78
      %v820 = vpop.permute.xlu0 %819
      %821 = vrot.lane.b32.xlu0 %v380, 78
      %v822 = vpop.permute.xlu0 %821
      %823 = vrot.lane.b32.xlu0 %v381, 78
      %v824 = vpop.permute.xlu0 %823
      %825 = vrot.lane.b32.xlu0 %v382, 78
      %v826 = vpop.permute.xlu0 %825
      %827 = vrot.lane.b32.xlu0 %v383, 78
      %v828 = vpop.permute.xlu0 %827
      %829 = vrot.lane.b32.xlu0 %v384, 78
      %v830 = vpop.permute.xlu0 %829
      %831 = vrot.lane.b32.xlu0 %v385, 78
      %v832 = vpop.permute.xlu0 %831
      %vm833 = vcmask 637952
      %v834 = vsel %vm833, %v802, %v804
      %v835 = vsel %vm833, %v804, %v806
      %v836 = vsel %vm833, %v806, %v808
      %v837 = vsel %vm833, %v810, %v812
      %v838 = vsel %vm833, %v812, %v814
      %v839 = vsel %vm833, %v814, %v816
      %v840 = vsel %vm833, %v818, %v820
      %v841 = vsel %vm833, %v820, %v822
      %v842 = vsel %vm833, %v822, %v824
      %v843 = vsel %vm833, %v826, %v828
      %v844 = vsel %vm833, %v828, %v830
      %v845 = vsel %vm833, %v830, %v832
      %v858 = vld [vmem:[%s2] sm:$0xff]
      %v859 = vld [vmem:[%s2 + $0x8] sm:$0xff]
      %v860 = vld [vmem:[%s2 + $0x10] sm:$0xff]
      %v861 = vld [vmem:[%s2 + $0x18] sm:$0xff]
      %v862 = vld [vmem:[%s2 + $0x20] sm:$0xff]
      %v863 = vld [vmem:[%s2 + $0x28] sm:$0xff]
      %v864 = vld [vmem:[%s2 + $0x30] sm:$0xff]
      %v865 = vld [vmem:[%s2 + $0x38] sm:$0xff]
      %v866 = vld [vmem:[%s2 + $0x40] sm:$0xff]
      %v867 = vld [vmem:[%s2 + $0x48] sm:$0xff]
      %v868 = vld [vmem:[%s2 + $0x50] sm:$0xff]
      %v869 = vld [vmem:[%s2 + $0x58] sm:$0xff]
      %vm870 = vcmask 261120
      %v872 = vsel %vm870, %v860, 0
      %v875 = vsel %vm870, %v863, 0
      %v878 = vsel %vm870, %v866, 0
      %v881 = vsel %vm870, %v869, 0
      %883 = vmatpush.msra.mxu0 %v558
      %884 = vmatpush.msra.mxu0 %v555
      %885 = vmatpush.msra.mxu0 %v552
      %886 = vmatpush.msra.mxu0 %v549
      %887 = vmatpush.msra.mxu0 %v501
      %888 = vmatpush.msra.mxu0 %v498
      %889 = vmatpush.msra.mxu0 %v495
      %890 = vmatpush.msra.mxu0 %v492
      %891 = vmatpush.msra.mxu0 %v444
      %892 = vmatpush.msra.mxu0 %v441
      %893 = vmatpush.msra.mxu0 %v438
      %894 = vmatpush.msra.mxu0 %v435
      %895 = vmatpush.msra.mxu0 %v382
      %896 = vmatpush.msra.mxu0 %v378
      %897 = vmatpush.msra.mxu0 %v374
      %898 = vmatpush.msra.mxu0 %v370
      %899 = vmatmul.f32.gmra.mxu0 %v858
      %v900 = vpop.f32.mrf.mxu0
      %v901 = vadd.f32 0.0, %v900
      %902 = vmatmul.f32.gmra.mxu0 %v861
      %v903 = vpop.f32.mrf.mxu0
      %v904 = vadd.f32 0.0, %v903
      %905 = vmatmul.f32.gmra.mxu0 %v864
      %v906 = vpop.f32.mrf.mxu0
      %v907 = vadd.f32 0.0, %v906
      %908 = vmatmul.f32.gmra.mxu0 %v867
      %v909 = vpop.f32.mrf.mxu0
      %v910 = vadd.f32 0.0, %v909
      %911 = vdwg.mxu0
      %912 = vmatpush.msra.mxu0 %v786
      %913 = vmatpush.msra.mxu0 %v783
      %914 = vmatpush.msra.mxu0 %v780
      %915 = vmatpush.msra.mxu0 %v777
      %916 = vmatpush.msra.mxu0 %v729
      %917 = vmatpush.msra.mxu0 %v726
      %918 = vmatpush.msra.mxu0 %v723
      %919 = vmatpush.msra.mxu0 %v720
      %920 = vmatpush.msra.mxu0 %v672
      %921 = vmatpush.msra.mxu0 %v669
      %922 = vmatpush.msra.mxu0 %v666
      %923 = vmatpush.msra.mxu0 %v663
      %924 = vmatpush.msra.mxu0 %v615
      %925 = vmatpush.msra.mxu0 %v612
      %926 = vmatpush.msra.mxu0 %v609
      %927 = vmatpush.msra.mxu0 %v606
      %928 = vmatmul.f32.gmra.mxu0 %v859
      %v929 = vpop.f32.mrf.mxu0
      %v930 = vadd.f32 %v901, %v929
      %931 = vmatmul.f32.gmra.mxu0 %v862
      %v932 = vpop.f32.mrf.mxu0
      %v933 = vadd.f32 %v904, %v932
      %934 = vmatmul.f32.gmra.mxu0 %v865
      %v935 = vpop.f32.mrf.mxu0
      %v936 = vadd.f32 %v907, %v935
      %937 = vmatmul.f32.gmra.mxu0 %v868
      %v938 = vpop.f32.mrf.mxu0
      %v939 = vadd.f32 %v910, %v938
      %940 = vdwg.mxu0
      %941 = vmatpush.msra.mxu0 0.0
      %942 = vmatpush.msra.mxu0 0.0
      %943 = vmatpush.msra.mxu0 0.0
      %944 = vmatpush.msra.mxu0 0.0
      %945 = vmatpush.msra.mxu0 0.0
      %946 = vmatpush.msra.mxu0 0.0
      %947 = vmatpush.msra.mxu0 0.0
      %948 = vmatpush.msra.mxu0 0.0
      %949 = vmatpush.msra.mxu0 0.0
      %950 = vmatpush.msra.mxu0 0.0
      %951 = vmatpush.msra.mxu0 0.0
      %952 = vmatpush.msra.mxu0 0.0
      %953 = vmatpush.msra.mxu0 %v843
      %954 = vmatpush.msra.mxu0 %v840
      %955 = vmatpush.msra.mxu0 %v837
      %956 = vmatpush.msra.mxu0 %v834
      %957 = vmatmul.f32.gmra.mxu0 %v872
      %v958 = vpop.f32.mrf.mxu0
      %v959 = vadd.f32 %v930, %v958
      %960 = vmatmul.f32.gmra.mxu0 %v875
      %v961 = vpop.f32.mrf.mxu0
      %v962 = vadd.f32 %v933, %v961
      %963 = vmatmul.f32.gmra.mxu0 %v878
      %v964 = vpop.f32.mrf.mxu0
      %v965 = vadd.f32 %v936, %v964
      %966 = vmatmul.f32.gmra.mxu0 %v881
      %v967 = vpop.f32.mrf.mxu0
      %v968 = vadd.f32 %v939, %v967
      %969 = vdwg.mxu0
      %970 = vmatpush.msra.mxu0 %v559
      %971 = vmatpush.msra.mxu0 %v556
      %972 = vmatpush.msra.mxu0 %v553
      %973 = vmatpush.msra.mxu0 %v550
      %974 = vmatpush.msra.mxu0 %v502
      %975 = vmatpush.msra.mxu0 %v499
      %976 = vmatpush.msra.mxu0 %v496
      %977 = vmatpush.msra.mxu0 %v493
      %978 = vmatpush.msra.mxu0 %v445
      %979 = vmatpush.msra.mxu0 %v442
      %980 = vmatpush.msra.mxu0 %v439
      %981 = vmatpush.msra.mxu0 %v436
      %982 = vmatpush.msra.mxu0 %v383
      %983 = vmatpush.msra.mxu0 %v379
      %984 = vmatpush.msra.mxu0 %v375
      %985 = vmatpush.msra.mxu0 %v371
      %986 = vmatmul.f32.gmra.mxu0 %v858
      %v987 = vpop.f32.mrf.mxu0
      %v988 = vadd.f32 0.0, %v987
      %989 = vmatmul.f32.gmra.mxu0 %v861
      %v990 = vpop.f32.mrf.mxu0
      %v991 = vadd.f32 0.0, %v990
      %992 = vmatmul.f32.gmra.mxu0 %v864
      %v993 = vpop.f32.mrf.mxu0
      %v994 = vadd.f32 0.0, %v993
      %995 = vmatmul.f32.gmra.mxu0 %v867
      %v996 = vpop.f32.mrf.mxu0
      %v997 = vadd.f32 0.0, %v996
      %998 = vdwg.mxu0
      %999 = vmatpush.msra.mxu0 %v787
      %1000 = vmatpush.msra.mxu0 %v784
      %1001 = vmatpush.msra.mxu0 %v781
      %1002 = vmatpush.msra.mxu0 %v778
      %1003 = vmatpush.msra.mxu0 %v730
      %1004 = vmatpush.msra.mxu0 %v727
      %1005 = vmatpush.msra.mxu0 %v724
      %1006 = vmatpush.msra.mxu0 %v721
      %1007 = vmatpush.msra.mxu0 %v673
      %1008 = vmatpush.msra.mxu0 %v670
      %1009 = vmatpush.msra.mxu0 %v667
      %1010 = vmatpush.msra.mxu0 %v664
      %1011 = vmatpush.msra.mxu0 %v616
      %1012 = vmatpush.msra.mxu0 %v613
      %1013 = vmatpush.msra.mxu0 %v610
      %1014 = vmatpush.msra.mxu0 %v607
      %1015 = vmatmul.f32.gmra.mxu0 %v859
      %v1016 = vpop.f32.mrf.mxu0
      %v1017 = vadd.f32 %v988, %v1016
      %1018 = vmatmul.f32.gmra.mxu0 %v862
      %v1019 = vpop.f32.mrf.mxu0
      %v1020 = vadd.f32 %v991, %v1019
      %1021 = vmatmul.f32.gmra.mxu0 %v865
      %v1022 = vpop.f32.mrf.mxu0
      %v1023 = vadd.f32 %v994, %v1022
      %1024 = vmatmul.f32.gmra.mxu0 %v868
      %v1025 = vpop.f32.mrf.mxu0
      %v1026 = vadd.f32 %v997, %v1025
      %1027 = vdwg.mxu0
      %1028 = vmatpush.msra.mxu0 0.0
      %1029 = vmatpush.msra.mxu0 0.0
      %1030 = vmatpush.msra.mxu0 0.0
      %1031 = vmatpush.msra.mxu0 0.0
      %1032 = vmatpush.msra.mxu0 0.0
      %1033 = vmatpush.msra.mxu0 0.0
      %1034 = vmatpush.msra.mxu0 0.0
      %1035 = vmatpush.msra.mxu0 0.0
      %1036 = vmatpush.msra.mxu0 0.0
      %1037 = vmatpush.msra.mxu0 0.0
      %1038 = vmatpush.msra.mxu0 0.0
      %1039 = vmatpush.msra.mxu0 0.0
      %1040 = vmatpush.msra.mxu0 %v844
      %1041 = vmatpush.msra.mxu0 %v841
      %1042 = vmatpush.msra.mxu0 %v838
      %1043 = vmatpush.msra.mxu0 %v835
      %1044 = vmatmul.f32.gmra.mxu0 %v872
      %v1045 = vpop.f32.mrf.mxu0
      %v1046 = vadd.f32 %v1017, %v1045
      %1047 = vmatmul.f32.gmra.mxu0 %v875
      %v1048 = vpop.f32.mrf.mxu0
      %v1049 = vadd.f32 %v1020, %v1048
      %1050 = vmatmul.f32.gmra.mxu0 %v878
      %v1051 = vpop.f32.mrf.mxu0
      %v1052 = vadd.f32 %v1023, %v1051
      %1053 = vmatmul.f32.gmra.mxu0 %v881
      %v1054 = vpop.f32.mrf.mxu0
      %v1055 = vadd.f32 %v1026, %v1054
      %1056 = vdwg.mxu0
      %1057 = vmatpush.msra.mxu0 %v560
      %1058 = vmatpush.msra.mxu0 %v557
      %1059 = vmatpush.msra.mxu0 %v554
      %1060 = vmatpush.msra.mxu0 %v551
      %1061 = vmatpush.msra.mxu0 %v503
      %1062 = vmatpush.msra.mxu0 %v500
      %1063 = vmatpush.msra.mxu0 %v497
      %1064 = vmatpush.msra.mxu0 %v494
      %1065 = vmatpush.msra.mxu0 %v446
      %1066 = vmatpush.msra.mxu0 %v443
      %1067 = vmatpush.msra.mxu0 %v440
      %1068 = vmatpush.msra.mxu0 %v437
      %1069 = vmatpush.msra.mxu0 %v384
      %1070 = vmatpush.msra.mxu0 %v380
      %1071 = vmatpush.msra.mxu0 %v376
      %1072 = vmatpush.msra.mxu0 %v372
      %1073 = vmatmul.f32.gmra.mxu0 %v858
      %v1074 = vpop.f32.mrf.mxu0
      %v1075 = vadd.f32 0.0, %v1074
      %1076 = vmatmul.f32.gmra.mxu0 %v861
      %v1077 = vpop.f32.mrf.mxu0
      %v1078 = vadd.f32 0.0, %v1077
      %1079 = vmatmul.f32.gmra.mxu0 %v864
      %v1080 = vpop.f32.mrf.mxu0
      %v1081 = vadd.f32 0.0, %v1080
      %1082 = vmatmul.f32.gmra.mxu0 %v867
      %v1083 = vpop.f32.mrf.mxu0
      %v1084 = vadd.f32 0.0, %v1083
      %1085 = vdwg.mxu0
      %1086 = vmatpush.msra.mxu0 %v788
      %1087 = vmatpush.msra.mxu0 %v785
      %1088 = vmatpush.msra.mxu0 %v782
      %1089 = vmatpush.msra.mxu0 %v779
      %1090 = vmatpush.msra.mxu0 %v731
      %1091 = vmatpush.msra.mxu0 %v728
      %1092 = vmatpush.msra.mxu0 %v725
      %1093 = vmatpush.msra.mxu0 %v722
      %1094 = vmatpush.msra.mxu0 %v674
      %1095 = vmatpush.msra.mxu0 %v671
      %1096 = vmatpush.msra.mxu0 %v668
      %1097 = vmatpush.msra.mxu0 %v665
      %1098 = vmatpush.msra.mxu0 %v617
      %1099 = vmatpush.msra.mxu0 %v614
      %1100 = vmatpush.msra.mxu0 %v611
      %1101 = vmatpush.msra.mxu0 %v608
      %1102 = vmatmul.f32.gmra.mxu0 %v859
      %v1103 = vpop.f32.mrf.mxu0
      %v1104 = vadd.f32 %v1075, %v1103
      %1105 = vmatmul.f32.gmra.mxu0 %v862
      %v1106 = vpop.f32.mrf.mxu0
      %v1107 = vadd.f32 %v1078, %v1106
      %1108 = vmatmul.f32.gmra.mxu0 %v865
      %v1109 = vpop.f32.mrf.mxu0
      %v1110 = vadd.f32 %v1081, %v1109
      %1111 = vmatmul.f32.gmra.mxu0 %v868
      %v1112 = vpop.f32.mrf.mxu0
      %v1113 = vadd.f32 %v1084, %v1112
      %1114 = vdwg.mxu0
      %1115 = vmatpush.msra.mxu0 0.0
      %1116 = vmatpush.msra.mxu0 0.0
      %1117 = vmatpush.msra.mxu0 0.0
      %1118 = vmatpush.msra.mxu0 0.0
      %1119 = vmatpush.msra.mxu0 0.0
      %1120 = vmatpush.msra.mxu0 0.0
      %1121 = vmatpush.msra.mxu0 0.0
      %1122 = vmatpush.msra.mxu0 0.0
      %1123 = vmatpush.msra.mxu0 0.0
      %1124 = vmatpush.msra.mxu0 0.0
      %1125 = vmatpush.msra.mxu0 0.0
      %1126 = vmatpush.msra.mxu0 0.0
      %1127 = vmatpush.msra.mxu0 %v845
      %1128 = vmatpush.msra.mxu0 %v842
      %1129 = vmatpush.msra.mxu0 %v839
      %1130 = vmatpush.msra.mxu0 %v836
      %1131 = vmatmul.f32.gmra.mxu0 %v872
      %v1132 = vpop.f32.mrf.mxu0
      %v1133 = vadd.f32 %v1104, %v1132
      %1134 = vmatmul.f32.gmra.mxu0 %v875
      %v1135 = vpop.f32.mrf.mxu0
      %v1136 = vadd.f32 %v1107, %v1135
      %1137 = vmatmul.f32.gmra.mxu0 %v878
      %v1138 = vpop.f32.mrf.mxu0
      %v1139 = vadd.f32 %v1110, %v1138
      %1140 = vmatmul.f32.gmra.mxu0 %v881
      %v1141 = vpop.f32.mrf.mxu0
      %v1142 = vadd.f32 %v1113, %v1141
      %1143 = vdwg.mxu0
      %v1144 = vld [vmem:[%s3] sm:$0xff]
      %v1145 = vld [vmem:[%s3 + $0x8] sm:$0xff]
      %v1146 = vld [vmem:[%s3 + $0x10] sm:$0xff]
      %v1147 = vld [vmem:[%s3 + $0x18] sm:$0xff]
      %1149 = vset.pattern.permute.xlu0 0
      %1150 = vperm.xlu0 %1149, %v1144
      %v1151 = vpop.permute.xlu0 %1150
      %1154 = vset.pattern.permute.xlu0 0
      %1155 = vperm.xlu0 %1154, %v1145
      %v1156 = vpop.permute.xlu0 %1155
      %1159 = vset.pattern.permute.xlu0 0
      %1160 = vperm.xlu0 %1159, %v1146
      %v1161 = vpop.permute.xlu0 %1160
      %1164 = vset.pattern.permute.xlu0 0
      %1165 = vperm.xlu0 %1164, %v1147
      %v1166 = vpop.permute.xlu0 %1165
      %v1168 = vmul.f32 %v959, %v1151
      %v1169 = vmul.f32 %v1046, %v1151
      %v1170 = vmul.f32 %v1133, %v1151
      %v1171 = vmul.f32 %v962, %v1156
      %v1172 = vmul.f32 %v1049, %v1156
      %v1173 = vmul.f32 %v1136, %v1156
      %v1174 = vmul.f32 %v965, %v1161
      %v1175 = vmul.f32 %v1052, %v1161
      %v1176 = vmul.f32 %v1139, %v1161
      %v1177 = vmul.f32 %v968, %v1166
      %v1178 = vmul.f32 %v1055, %v1166
      %v1179 = vmul.f32 %v1142, %v1166
      %v1180 = vld [vmem:[%s4] sm:$0xff]
      %v1181 = vld [vmem:[%s4 + $0x8] sm:$0xff]
      %v1182 = vld [vmem:[%s4 + $0x10] sm:$0xff]
      %v1183 = vld [vmem:[%s4 + $0x18] sm:$0xff]
      %1185 = vset.pattern.permute.xlu0 0
      %1186 = vperm.xlu0 %1185, %v1180
      %v1187 = vpop.permute.xlu0 %1186
      %1190 = vset.pattern.permute.xlu0 0
      %1191 = vperm.xlu0 %1190, %v1181
      %v1192 = vpop.permute.xlu0 %1191
      %1195 = vset.pattern.permute.xlu0 0
      %1196 = vperm.xlu0 %1195, %v1182
      %v1197 = vpop.permute.xlu0 %1196
      %1200 = vset.pattern.permute.xlu0 0
      %1201 = vperm.xlu0 %1200, %v1183
      %v1202 = vpop.permute.xlu0 %1201
      %v1204 = vadd.f32 %v1168, %v1187
      %v1205 = vadd.f32 %v1169, %v1187
      %v1206 = vadd.f32 %v1170, %v1187
      %v1207 = vadd.f32 %v1171, %v1192
      %v1208 = vadd.f32 %v1172, %v1192
      %v1209 = vadd.f32 %v1173, %v1192
      %v1210 = vadd.f32 %v1174, %v1197
      %v1211 = vadd.f32 %v1175, %v1197
      %v1212 = vadd.f32 %v1176, %v1197
      %v1213 = vadd.f32 %v1177, %v1202
      %v1214 = vadd.f32 %v1178, %v1202
      %v1215 = vadd.f32 %v1179, %v1202
      %1232 = vrot.lane.b32.xlu0 %v306, 103
      %v1233 = vpop.permute.xlu0 %1232
      %1234 = vrot.lane.b32.xlu0 %v307, 103
      %v1235 = vpop.permute.xlu0 %1234
      %1236 = vrot.lane.b32.xlu0 %v308, 103
      %v1237 = vpop.permute.xlu0 %1236
      %1238 = vrot.lane.b32.xlu0 %v309, 103
      %v1239 = vpop.permute.xlu0 %1238
      %1240 = vrot.lane.b32.xlu0 %v310, 103
      %v1241 = vpop.permute.xlu0 %1240
      %1242 = vrot.lane.b32.xlu0 %v311, 103
      %v1243 = vpop.permute.xlu0 %1242
      %1244 = vrot.lane.b32.xlu0 %v312, 103
      %v1245 = vpop.permute.xlu0 %1244
      %1246 = vrot.lane.b32.xlu0 %v313, 103
      %v1247 = vpop.permute.xlu0 %1246
      %1248 = vrot.lane.b32.xlu0 %v314, 103
      %v1249 = vpop.permute.xlu0 %1248
      %1250 = vrot.lane.b32.xlu0 %v315, 103
      %v1251 = vpop.permute.xlu0 %1250
      %1252 = vrot.lane.b32.xlu0 %v316, 103
      %v1253 = vpop.permute.xlu0 %1252
      %1254 = vrot.lane.b32.xlu0 %v317, 103
      %v1255 = vpop.permute.xlu0 %1254
      %1256 = vrot.lane.b32.xlu0 %v318, 103
      %v1257 = vpop.permute.xlu0 %1256
      %1258 = vrot.lane.b32.xlu0 %v319, 103
      %v1259 = vpop.permute.xlu0 %1258
      %1260 = vrot.lane.b32.xlu0 %v320, 103
      %v1261 = vpop.permute.xlu0 %1260
      %1262 = vrot.lane.b32.xlu0 %v321, 103
      %v1263 = vpop.permute.xlu0 %1262
      %v1264 = vsel %vm605, %v1233, %v1235
      %v1265 = vsel %vm605, %v1235, %v1237
      %v1266 = vsel %vm605, %v1237, %v1239
      %v1267 = vsel %vm605, %v1241, %v1243
      %v1268 = vsel %vm605, %v1243, %v1245
      %v1269 = vsel %vm605, %v1245, %v1247
      %v1270 = vsel %vm605, %v1249, %v1251
      %v1271 = vsel %vm605, %v1251, %v1253
      %v1272 = vsel %vm605, %v1253, %v1255
      %v1273 = vsel %vm605, %v1257, %v1259
      %v1274 = vsel %vm605, %v1259, %v1261
      %v1275 = vsel %vm605, %v1261, %v1263
      %v1288 = vadd.f32 %v1204, %v1264
      %v1289 = vadd.f32 %v1205, %v1265
      %v1290 = vadd.f32 %v1206, %v1266
      %v1291 = vadd.f32 %v1207, %v1267
      %v1292 = vadd.f32 %v1208, %v1268
      %v1293 = vadd.f32 %v1209, %v1269
      %v1294 = vadd.f32 %v1210, %v1270
      %v1295 = vadd.f32 %v1211, %v1271
      %v1296 = vadd.f32 %v1212, %v1272
      %v1297 = vadd.f32 %v1213, %v1273
      %v1298 = vadd.f32 %v1214, %v1274
      %v1299 = vadd.f32 %v1215, %v1275
      %1300 = vst [vmem:[#allocation2] sm:$0xff] 0.0
      %1301 = vst [vmem:[#allocation2 + $0x8] sm:$0xff] 0.0
      %1302 = vst [vmem:[#allocation2 + $0x10] sm:$0xff] 0.0
      %1303 = vst [vmem:[#allocation2 + $0x18] sm:$0xff] 0.0
      %1304 = vst [vmem:[#allocation2 + $0x20] sm:$0xff] 0.0
      %1305 = vst [vmem:[#allocation2 + $0x28] sm:$0xff] 0.0
      %1306 = vst [vmem:[#allocation2 + $0x30] sm:$0xff] 0.0
      %1307 = vst [vmem:[#allocation2 + $0x38] sm:$0xff] 0.0
      %1308 = vst [vmem:[#allocation2 + $0x40] sm:$0xff] 0.0
      %1309 = vst [vmem:[#allocation2 + $0x48] sm:$0xff] 0.0
      %1310 = vst [vmem:[#allocation2 + $0x50] sm:$0xff] 0.0
      %1311 = vst [vmem:[#allocation2 + $0x58] sm:$0xff] 0.0
      %1312 = vst [vmem:[#allocation2 + $0x60] sm:$0xff] 0.0
      %1313 = vst [vmem:[#allocation2 + $0x68] sm:$0xff] 0.0
      %1314 = vst [vmem:[#allocation2 + $0x70] sm:$0xff] 0.0
      %1315 = vst [vmem:[#allocation2 + $0x78] sm:$0xff] 0.0
      %vm1316 = vcmp.gt.f32.partialorder %v1288, 0.0
      %vm1317 = vcmp.gt.f32.partialorder %v1289, 0.0
      %vm1318 = vcmp.gt.f32.partialorder %v1290, 0.0
      %vm1319 = vcmp.gt.f32.partialorder %v1291, 0.0
      %vm1320 = vcmp.gt.f32.partialorder %v1292, 0.0
      %vm1321 = vcmp.gt.f32.partialorder %v1293, 0.0
      %vm1322 = vcmp.gt.f32.partialorder %v1294, 0.0
      %vm1323 = vcmp.gt.f32.partialorder %v1295, 0.0
      %vm1324 = vcmp.gt.f32.partialorder %v1296, 0.0
      %vm1325 = vcmp.gt.f32.partialorder %v1297, 0.0
      %vm1326 = vcmp.gt.f32.partialorder %v1298, 0.0
      %vm1327 = vcmp.gt.f32.partialorder %v1299, 0.0
      %vm1328 = vcmp.lt.f32.partialorder %v1288, 0.0
      %vm1329 = vcmp.lt.f32.partialorder %v1289, 0.0
      %vm1330 = vcmp.lt.f32.partialorder %v1290, 0.0
      %vm1331 = vcmp.lt.f32.partialorder %v1291, 0.0
      %vm1332 = vcmp.lt.f32.partialorder %v1292, 0.0
      %vm1333 = vcmp.lt.f32.partialorder %v1293, 0.0
      %vm1334 = vcmp.lt.f32.partialorder %v1294, 0.0
      %vm1335 = vcmp.lt.f32.partialorder %v1295, 0.0
      %vm1336 = vcmp.lt.f32.partialorder %v1296, 0.0
      %vm1337 = vcmp.lt.f32.partialorder %v1297, 0.0
      %vm1338 = vcmp.lt.f32.partialorder %v1298, 0.0
      %vm1339 = vcmp.lt.f32.partialorder %v1299, 0.0
      %v1340 = vsel %vm1328, -1.0, 0.0
      %v1341 = vsel %vm1329, -1.0, 0.0
      %v1342 = vsel %vm1330, -1.0, 0.0
      %v1343 = vsel %vm1331, -1.0, 0.0
      %v1344 = vsel %vm1332, -1.0, 0.0
      %v1345 = vsel %vm1333, -1.0, 0.0
      %v1346 = vsel %vm1334, -1.0, 0.0
      %v1347 = vsel %vm1335, -1.0, 0.0
      %v1348 = vsel %vm1336, -1.0, 0.0
      %v1349 = vsel %vm1337, -1.0, 0.0
      %v1350 = vsel %vm1338, -1.0, 0.0
      %v1351 = vsel %vm1339, -1.0, 0.0
      %v1352 = vsel %vm1316, 1.0, %v1340
      %v1353 = vsel %vm1317, 1.0, %v1341
      %v1354 = vsel %vm1318, 1.0, %v1342
      %v1355 = vsel %vm1319, 1.0, %v1343
      %v1356 = vsel %vm1320, 1.0, %v1344
      %v1357 = vsel %vm1321, 1.0, %v1345
      %v1358 = vsel %vm1322, 1.0, %v1346
      %v1359 = vsel %vm1323, 1.0, %v1347
      %v1360 = vsel %vm1324, 1.0, %v1348
      %v1361 = vsel %vm1325, 1.0, %v1349
      %v1362 = vsel %vm1326, 1.0, %v1350
      %v1363 = vsel %vm1327, 1.0, %v1351
      %v1364 = vld [vmem:[%s1] sm:$0x7]
      %v1366 = vperm.slane %v1364, 0
      %v1367 = vperm.slane %v1364, 1
      %v1368 = vperm.slane %v1364, 2
      %v1372 = vmul.f32 %v1352, %v1366
      %v1373 = vmul.f32 %v1353, %v1367
      %v1374 = vmul.f32 %v1354, %v1368
      %v1375 = vmul.f32 %v1355, %v1366
      %v1376 = vmul.f32 %v1356, %v1367
      %v1377 = vmul.f32 %v1357, %v1368
      %v1378 = vmul.f32 %v1358, %v1366
      %v1379 = vmul.f32 %v1359, %v1367
      %v1380 = vmul.f32 %v1360, %v1368
      %v1381 = vmul.f32 %v1361, %v1366
      %v1382 = vmul.f32 %v1362, %v1367
      %v1383 = vmul.f32 %v1363, %v1368
      %1396 = vrot.lane.b32.xlu0 %v1372, 25
      %v1397 = vpop.permute.xlu0 %1396
      %1398 = vrot.lane.b32.xlu0 %v1373, 25
      %v1399 = vpop.permute.xlu0 %1398
      %1400 = vrot.lane.b32.xlu0 %v1374, 25
      %v1401 = vpop.permute.xlu0 %1400
      %1402 = vrot.lane.b32.xlu0 %v1375, 25
      %v1403 = vpop.permute.xlu0 %1402
      %1404 = vrot.lane.b32.xlu0 %v1376, 25
      %v1405 = vpop.permute.xlu0 %1404
      %1406 = vrot.lane.b32.xlu0 %v1377, 25
      %v1407 = vpop.permute.xlu0 %1406
      %1408 = vrot.lane.b32.xlu0 %v1378, 25
      %v1409 = vpop.permute.xlu0 %1408
      %1410 = vrot.lane.b32.xlu0 %v1379, 25
      %v1411 = vpop.permute.xlu0 %1410
      %1412 = vrot.lane.b32.xlu0 %v1380, 25
      %v1413 = vpop.permute.xlu0 %1412
      %1414 = vrot.lane.b32.xlu0 %v1381, 25
      %v1415 = vpop.permute.xlu0 %1414
      %1416 = vrot.lane.b32.xlu0 %v1382, 25
      %v1417 = vpop.permute.xlu0 %1416
      %1418 = vrot.lane.b32.xlu0 %v1383, 25
      %v1419 = vpop.permute.xlu0 %1418
      %vm1420 = vcmask 203776
      %v1421 = vsel %vm1420, %v1397, %v1399
      %v1422 = vsel %vm1420, %v1399, %v1401
      %v1423 = vsel %vm1420, %v1403, %v1405
      %v1424 = vsel %vm1420, %v1405, %v1407
      %v1425 = vsel %vm1420, %v1409, %v1411
      %v1426 = vsel %vm1420, %v1411, %v1413
      %v1427 = vsel %vm1420, %v1415, %v1417
      %v1428 = vsel %vm1420, %v1417, %v1419
      %vm1445 = vcmask 1047752
      %1446 = vst.msk [vmem:[#allocation2] sm:$0xff] %vm1445, %v1397
      %1447 = vst [vmem:[#allocation2 + $0x8] sm:$0xff] %v1421
      %1448 = vst [vmem:[#allocation2 + $0x10] sm:$0xff] %v1422
      %1449 = vst.msk [vmem:[#allocation2 + $0x18] sm:$0xff] %vm1420, %v1401
      %1450 = vst.msk [vmem:[#allocation2 + $0x20] sm:$0xff] %vm1445, %v1403
      %1451 = vst [vmem:[#allocation2 + $0x28] sm:$0xff] %v1423
      %1452 = vst [vmem:[#allocation2 + $0x30] sm:$0xff] %v1424
      %1453 = vst.msk [vmem:[#allocation2 + $0x38] sm:$0xff] %vm1420, %v1407
      %1454 = vst.msk [vmem:[#allocation2 + $0x40] sm:$0xff] %vm1445, %v1409
      %1455 = vst [vmem:[#allocation2 + $0x48] sm:$0xff] %v1425
      %1456 = vst [vmem:[#allocation2 + $0x50] sm:$0xff] %v1426
      %1457 = vst.msk [vmem:[#allocation2 + $0x58] sm:$0xff] %vm1420, %v1413
      %1458 = vst.msk [vmem:[#allocation2 + $0x60] sm:$0xff] %vm1445, %v1415
      %1459 = vst [vmem:[#allocation2 + $0x68] sm:$0xff] %v1427
      %1460 = vst [vmem:[#allocation2 + $0x70] sm:$0xff] %v1428
      %1461 = vst.msk [vmem:[#allocation2 + $0x78] sm:$0xff] %vm1420, %v1419
      %v1462 = vld [vmem:[#allocation2] sm:$0xff]
      %v1463 = vld [vmem:[#allocation2 + $0x8] sm:$0xff]
      %v1464 = vld [vmem:[#allocation2 + $0x10] sm:$0xff]
      %v1465 = vld [vmem:[#allocation2 + $0x18] sm:$0xff]
      %v1466 = vld [vmem:[#allocation2 + $0x20] sm:$0xff]
      %v1467 = vld [vmem:[#allocation2 + $0x28] sm:$0xff]
      %v1468 = vld [vmem:[#allocation2 + $0x30] sm:$0xff]
      %v1469 = vld [vmem:[#allocation2 + $0x38] sm:$0xff]
      %v1470 = vld [vmem:[#allocation2 + $0x40] sm:$0xff]
      %v1471 = vld [vmem:[#allocation2 + $0x48] sm:$0xff]
      %v1472 = vld [vmem:[#allocation2 + $0x50] sm:$0xff]
      %v1473 = vld [vmem:[#allocation2 + $0x58] sm:$0xff]
      %v1474 = vld [vmem:[#allocation2 + $0x60] sm:$0xff]
      %v1475 = vld [vmem:[#allocation2 + $0x68] sm:$0xff]
      %v1476 = vld [vmem:[#allocation2 + $0x70] sm:$0xff]
      %v1477 = vld [vmem:[#allocation2 + $0x78] sm:$0xff]
      %1494 = vrot.lane.b32.xlu0 %v1462, 127
      %v1495 = vpop.permute.xlu0 %1494
      %1496 = vrot.lane.b32.xlu0 %v1463, 127
      %v1497 = vpop.permute.xlu0 %1496
      %1498 = vrot.lane.b32.xlu0 %v1464, 127
      %v1499 = vpop.permute.xlu0 %1498
      %1500 = vrot.lane.b32.xlu0 %v1465, 127
      %v1501 = vpop.permute.xlu0 %1500
      %1502 = vrot.lane.b32.xlu0 %v1466, 127
      %v1503 = vpop.permute.xlu0 %1502
      %1504 = vrot.lane.b32.xlu0 %v1467, 127
      %v1505 = vpop.permute.xlu0 %1504
      %1506 = vrot.lane.b32.xlu0 %v1468, 127
      %v1507 = vpop.permute.xlu0 %1506
      %1508 = vrot.lane.b32.xlu0 %v1469, 127
      %v1509 = vpop.permute.xlu0 %1508
      %1510 = vrot.lane.b32.xlu0 %v1470, 127
      %v1511 = vpop.permute.xlu0 %1510
      %1512 = vrot.lane.b32.xlu0 %v1471, 127
      %v1513 = vpop.permute.xlu0 %1512
      %1514 = vrot.lane.b32.xlu0 %v1472, 127
      %v1515 = vpop.permute.xlu0 %1514
      %1516 = vrot.lane.b32.xlu0 %v1473, 127
      %v1517 = vpop.permute.xlu0 %1516
      %1518 = vrot.lane.b32.xlu0 %v1474, 127
      %v1519 = vpop.permute.xlu0 %1518
      %1520 = vrot.lane.b32.xlu0 %v1475, 127
      %v1521 = vpop.permute.xlu0 %1520
      %1522 = vrot.lane.b32.xlu0 %v1476, 127
      %v1523 = vpop.permute.xlu0 %1522
      %1524 = vrot.lane.b32.xlu0 %v1477, 127
      %v1525 = vpop.permute.xlu0 %1524
      %v1526 = vsel %vm434, %v1495, %v1497
      %v1527 = vsel %vm434, %v1497, %v1499
      %v1528 = vsel %vm434, %v1499, %v1501
      %v1529 = vsel %vm434, %v1503, %v1505
      %v1530 = vsel %vm434, %v1505, %v1507
      %v1531 = vsel %vm434, %v1507, %v1509
      %v1532 = vsel %vm434, %v1511, %v1513
      %v1533 = vsel %vm434, %v1513, %v1515
      %v1534 = vsel %vm434, %v1515, %v1517
      %v1535 = vsel %vm434, %v1519, %v1521
      %v1536 = vsel %vm434, %v1521, %v1523
      %v1537 = vsel %vm434, %v1523, %v1525
      %1550 = vrot.lane.b32.xlu0 %v1462, 126
      %v1551 = vpop.permute.xlu0 %1550
      %1552 = vrot.lane.b32.xlu0 %v1463, 126
      %v1553 = vpop.permute.xlu0 %1552
      %1554 = vrot.lane.b32.xlu0 %v1464, 126
      %v1555 = vpop.permute.xlu0 %1554
      %1556 = vrot.lane.b32.xlu0 %v1465, 126
      %v1557 = vpop.permute.xlu0 %1556
      %1558 = vrot.lane.b32.xlu0 %v1466, 126
      %v1559 = vpop.permute.xlu0 %1558
      %1560 = vrot.lane.b32.xlu0 %v1467, 126
      %v1561 = vpop.permute.xlu0 %1560
      %1562 = vrot.lane.b32.xlu0 %v1468, 126
      %v1563 = vpop.permute.xlu0 %1562
      %1564 = vrot.lane.b32.xlu0 %v1469, 126
      %v1565 = vpop.permute.xlu0 %1564
      %1566 = vrot.lane.b32.xlu0 %v1470, 126
      %v1567 = vpop.permute.xlu0 %1566
      %1568 = vrot.lane.b32.xlu0 %v1471, 126
      %v1569 = vpop.permute.xlu0 %1568
      %1570 = vrot.lane.b32.xlu0 %v1472, 126
      %v1571 = vpop.permute.xlu0 %1570
      %1572 = vrot.lane.b32.xlu0 %v1473, 126
      %v1573 = vpop.permute.xlu0 %1572
      %1574 = vrot.lane.b32.xlu0 %v1474, 126
      %v1575 = vpop.permute.xlu0 %1574
      %1576 = vrot.lane.b32.xlu0 %v1475, 126
      %v1577 = vpop.permute.xlu0 %1576
      %1578 = vrot.lane.b32.xlu0 %v1476, 126
      %v1579 = vpop.permute.xlu0 %1578
      %1580 = vrot.lane.b32.xlu0 %v1477, 126
      %v1581 = vpop.permute.xlu0 %1580
      %v1582 = vsel %vm491, %v1551, %v1553
      %v1583 = vsel %vm491, %v1553, %v1555
      %v1584 = vsel %vm491, %v1555, %v1557
      %v1585 = vsel %vm491, %v1559, %v1561
      %v1586 = vsel %vm491, %v1561, %v1563
      %v1587 = vsel %vm491, %v1563, %v1565
      %v1588 = vsel %vm491, %v1567, %v1569
      %v1589 = vsel %vm491, %v1569, %v1571
      %v1590 = vsel %vm491, %v1571, %v1573
      %v1591 = vsel %vm491, %v1575, %v1577
      %v1592 = vsel %vm491, %v1577, %v1579
      %v1593 = vsel %vm491, %v1579, %v1581
      %1606 = vrot.lane.b32.xlu0 %v1462, 104
      %v1607 = vpop.permute.xlu0 %1606
      %1608 = vrot.lane.b32.xlu0 %v1463, 104
      %v1609 = vpop.permute.xlu0 %1608
      %1610 = vrot.lane.b32.xlu0 %v1464, 104
      %v1611 = vpop.permute.xlu0 %1610
      %1612 = vrot.lane.b32.xlu0 %v1465, 104
      %v1613 = vpop.permute.xlu0 %1612
      %1614 = vrot.lane.b32.xlu0 %v1466, 104
      %v1615 = vpop.permute.xlu0 %1614
      %1616 = vrot.lane.b32.xlu0 %v1467, 104
      %v1617 = vpop.permute.xlu0 %1616
      %1618 = vrot.lane.b32.xlu0 %v1468, 104
      %v1619 = vpop.permute.xlu0 %1618
      %1620 = vrot.lane.b32.xlu0 %v1469, 104
      %v1621 = vpop.permute.xlu0 %1620
      %1622 = vrot.lane.b32.xlu0 %v1470, 104
      %v1623 = vpop.permute.xlu0 %1622
      %1624 = vrot.lane.b32.xlu0 %v1471, 104
      %v1625 = vpop.permute.xlu0 %1624
      %1626 = vrot.lane.b32.xlu0 %v1472, 104
      %v1627 = vpop.permute.xlu0 %1626
      %1628 = vrot.lane.b32.xlu0 %v1473, 104
      %v1629 = vpop.permute.xlu0 %1628
      %1630 = vrot.lane.b32.xlu0 %v1474, 104
      %v1631 = vpop.permute.xlu0 %1630
      %1632 = vrot.lane.b32.xlu0 %v1475, 104
      %v1633 = vpop.permute.xlu0 %1632
      %1634 = vrot.lane.b32.xlu0 %v1476, 104
      %v1635 = vpop.permute.xlu0 %1634
      %1636 = vrot.lane.b32.xlu0 %v1477, 104
      %v1637 = vpop.permute.xlu0 %1636
      %v1638 = vsel %vm548, %v1607, %v1609
      %v1639 = vsel %vm548, %v1609, %v1611
      %v1640 = vsel %vm548, %v1611, %v1613
      %v1641 = vsel %vm548, %v1615, %v1617
      %v1642 = vsel %vm548, %v1617, %v1619
      %v1643 = vsel %vm548, %v1619, %v1621
      %v1644 = vsel %vm548, %v1623, %v1625
      %v1645 = vsel %vm548, %v1625, %v1627
      %v1646 = vsel %vm548, %v1627, %v1629
      %v1647 = vsel %vm548, %v1631, %v1633
      %v1648 = vsel %vm548, %v1633, %v1635
      %v1649 = vsel %vm548, %v1635, %v1637
      %1662 = vrot.lane.b32.xlu0 %v1462, 103
      %v1663 = vpop.permute.xlu0 %1662
      %1664 = vrot.lane.b32.xlu0 %v1463, 103
      %v1665 = vpop.permute.xlu0 %1664
      %1666 = vrot.lane.b32.xlu0 %v1464, 103
      %v1667 = vpop.permute.xlu0 %1666
      %1668 = vrot.lane.b32.xlu0 %v1465, 103
      %v1669 = vpop.permute.xlu0 %1668
      %1670 = vrot.lane.b32.xlu0 %v1466, 103
      %v1671 = vpop.permute.xlu0 %1670
      %1672 = vrot.lane.b32.xlu0 %v1467, 103
      %v1673 = vpop.permute.xlu0 %1672
      %1674 = vrot.lane.b32.xlu0 %v1468, 103
      %v1675 = vpop.permute.xlu0 %1674
      %1676 = vrot.lane.b32.xlu0 %v1469, 103
      %v1677 = vpop.permute.xlu0 %1676
      %1678 = vrot.lane.b32.xlu0 %v1470, 103
      %v1679 = vpop.permute.xlu0 %1678
      %1680 = vrot.lane.b32.xlu0 %v1471, 103
      %v1681 = vpop.permute.xlu0 %1680
      %1682 = vrot.lane.b32.xlu0 %v1472, 103
      %v1683 = vpop.permute.xlu0 %1682
      %1684 = vrot.lane.b32.xlu0 %v1473, 103
      %v1685 = vpop.permute.xlu0 %1684
      %1686 = vrot.lane.b32.xlu0 %v1474, 103
      %v1687 = vpop.permute.xlu0 %1686
      %1688 = vrot.lane.b32.xlu0 %v1475, 103
      %v1689 = vpop.permute.xlu0 %1688
      %1690 = vrot.lane.b32.xlu0 %v1476, 103
      %v1691 = vpop.permute.xlu0 %1690
      %1692 = vrot.lane.b32.xlu0 %v1477, 103
      %v1693 = vpop.permute.xlu0 %1692
      %v1694 = vsel %vm605, %v1663, %v1665
      %v1695 = vsel %vm605, %v1665, %v1667
      %v1696 = vsel %vm605, %v1667, %v1669
      %v1697 = vsel %vm605, %v1671, %v1673
      %v1698 = vsel %vm605, %v1673, %v1675
      %v1699 = vsel %vm605, %v1675, %v1677
      %v1700 = vsel %vm605, %v1679, %v1681
      %v1701 = vsel %vm605, %v1681, %v1683
      %v1702 = vsel %vm605, %v1683, %v1685
      %v1703 = vsel %vm605, %v1687, %v1689
      %v1704 = vsel %vm605, %v1689, %v1691
      %v1705 = vsel %vm605, %v1691, %v1693
      %1718 = vrot.lane.b32.xlu0 %v1462, 102
      %v1719 = vpop.permute.xlu0 %1718
      %1720 = vrot.lane.b32.xlu0 %v1463, 102
      %v1721 = vpop.permute.xlu0 %1720
      %1722 = vrot.lane.b32.xlu0 %v1464, 102
      %v1723 = vpop.permute.xlu0 %1722
      %1724 = vrot.lane.b32.xlu0 %v1465, 102
      %v1725 = vpop.permute.xlu0 %1724
      %1726 = vrot.lane.b32.xlu0 %v1466, 102
      %v1727 = vpop.permute.xlu0 %1726
      %1728 = vrot.lane.b32.xlu0 %v1467, 102
      %v1729 = vpop.permute.xlu0 %1728
      %1730 = vrot.lane.b32.xlu0 %v1468, 102
      %v1731 = vpop.permute.xlu0 %1730
      %1732 = vrot.lane.b32.xlu0 %v1469, 102
      %v1733 = vpop.permute.xlu0 %1732
      %1734 = vrot.lane.b32.xlu0 %v1470, 102
      %v1735 = vpop.permute.xlu0 %1734
      %1736 = vrot.lane.b32.xlu0 %v1471, 102
      %v1737 = vpop.permute.xlu0 %1736
      %1738 = vrot.lane.b32.xlu0 %v1472, 102
      %v1739 = vpop.permute.xlu0 %1738
      %1740 = vrot.lane.b32.xlu0 %v1473, 102
      %v1741 = vpop.permute.xlu0 %1740
      %1742 = vrot.lane.b32.xlu0 %v1474, 102
      %v1743 = vpop.permute.xlu0 %1742
      %1744 = vrot.lane.b32.xlu0 %v1475, 102
      %v1745 = vpop.permute.xlu0 %1744
      %1746 = vrot.lane.b32.xlu0 %v1476, 102
      %v1747 = vpop.permute.xlu0 %1746
      %1748 = vrot.lane.b32.xlu0 %v1477, 102
      %v1749 = vpop.permute.xlu0 %1748
      %v1750 = vsel %vm662, %v1719, %v1721
      %v1751 = vsel %vm662, %v1721, %v1723
      %v1752 = vsel %vm662, %v1723, %v1725
      %v1753 = vsel %vm662, %v1727, %v1729
      %v1754 = vsel %vm662, %v1729, %v1731
      %v1755 = vsel %vm662, %v1731, %v1733
      %v1756 = vsel %vm662, %v1735, %v1737
      %v1757 = vsel %vm662, %v1737, %v1739
      %v1758 = vsel %vm662, %v1739, %v1741
      %v1759 = vsel %vm662, %v1743, %v1745
      %v1760 = vsel %vm662, %v1745, %v1747
      %v1761 = vsel %vm662, %v1747, %v1749
      %1774 = vrot.lane.b32.xlu0 %v1462, 80
      %v1775 = vpop.permute.xlu0 %1774
      %1776 = vrot.lane.b32.xlu0 %v1463, 80
      %v1777 = vpop.permute.xlu0 %1776
      %1778 = vrot.lane.b32.xlu0 %v1464, 80
      %v1779 = vpop.permute.xlu0 %1778
      %1780 = vrot.lane.b32.xlu0 %v1465, 80
      %v1781 = vpop.permute.xlu0 %1780
      %1782 = vrot.lane.b32.xlu0 %v1466, 80
      %v1783 = vpop.permute.xlu0 %1782
      %1784 = vrot.lane.b32.xlu0 %v1467, 80
      %v1785 = vpop.permute.xlu0 %1784
      %1786 = vrot.lane.b32.xlu0 %v1468, 80
      %v1787 = vpop.permute.xlu0 %1786
      %1788 = vrot.lane.b32.xlu0 %v1469, 80
      %v1789 = vpop.permute.xlu0 %1788
      %1790 = vrot.lane.b32.xlu0 %v1470, 80
      %v1791 = vpop.permute.xlu0 %1790
      %1792 = vrot.lane.b32.xlu0 %v1471, 80
      %v1793 = vpop.permute.xlu0 %1792
      %1794 = vrot.lane.b32.xlu0 %v1472, 80
      %v1795 = vpop.permute.xlu0 %1794
      %1796 = vrot.lane.b32.xlu0 %v1473, 80
      %v1797 = vpop.permute.xlu0 %1796
      %1798 = vrot.lane.b32.xlu0 %v1474, 80
      %v1799 = vpop.permute.xlu0 %1798
      %1800 = vrot.lane.b32.xlu0 %v1475, 80
      %v1801 = vpop.permute.xlu0 %1800
      %1802 = vrot.lane.b32.xlu0 %v1476, 80
      %v1803 = vpop.permute.xlu0 %1802
      %1804 = vrot.lane.b32.xlu0 %v1477, 80
      %v1805 = vpop.permute.xlu0 %1804
      %v1806 = vsel %vm719, %v1775, %v1777
      %v1807 = vsel %vm719, %v1777, %v1779
      %v1808 = vsel %vm719, %v1779, %v1781
      %v1809 = vsel %vm719, %v1783, %v1785
      %v1810 = vsel %vm719, %v1785, %v1787
      %v1811 = vsel %vm719, %v1787, %v1789
      %v1812 = vsel %vm719, %v1791, %v1793
      %v1813 = vsel %vm719, %v1793, %v1795
      %v1814 = vsel %vm719, %v1795, %v1797
      %v1815 = vsel %vm719, %v1799, %v1801
      %v1816 = vsel %vm719, %v1801, %v1803
      %v1817 = vsel %vm719, %v1803, %v1805
      %1830 = vrot.lane.b32.xlu0 %v1462, 79
      %v1831 = vpop.permute.xlu0 %1830
      %1832 = vrot.lane.b32.xlu0 %v1463, 79
      %v1833 = vpop.permute.xlu0 %1832
      %1834 = vrot.lane.b32.xlu0 %v1464, 79
      %v1835 = vpop.permute.xlu0 %1834
      %1836 = vrot.lane.b32.xlu0 %v1465, 79
      %v1837 = vpop.permute.xlu0 %1836
      %1838 = vrot.lane.b32.xlu0 %v1466, 79
      %v1839 = vpop.permute.xlu0 %1838
      %1840 = vrot.lane.b32.xlu0 %v1467, 79
      %v1841 = vpop.permute.xlu0 %1840
      %1842 = vrot.lane.b32.xlu0 %v1468, 79
      %v1843 = vpop.permute.xlu0 %1842
      %1844 = vrot.lane.b32.xlu0 %v1469, 79
      %v1845 = vpop.permute.xlu0 %1844
      %1846 = vrot.lane.b32.xlu0 %v1470, 79
      %v1847 = vpop.permute.xlu0 %1846
      %1848 = vrot.lane.b32.xlu0 %v1471, 79
      %v1849 = vpop.permute.xlu0 %1848
      %1850 = vrot.lane.b32.xlu0 %v1472, 79
      %v1851 = vpop.permute.xlu0 %1850
      %1852 = vrot.lane.b32.xlu0 %v1473, 79
      %v1853 = vpop.permute.xlu0 %1852
      %1854 = vrot.lane.b32.xlu0 %v1474, 79
      %v1855 = vpop.permute.xlu0 %1854
      %1856 = vrot.lane.b32.xlu0 %v1475, 79
      %v1857 = vpop.permute.xlu0 %1856
      %1858 = vrot.lane.b32.xlu0 %v1476, 79
      %v1859 = vpop.permute.xlu0 %1858
      %1860 = vrot.lane.b32.xlu0 %v1477, 79
      %v1861 = vpop.permute.xlu0 %1860
      %v1862 = vsel %vm776, %v1831, %v1833
      %v1863 = vsel %vm776, %v1833, %v1835
      %v1864 = vsel %vm776, %v1835, %v1837
      %v1865 = vsel %vm776, %v1839, %v1841
      %v1866 = vsel %vm776, %v1841, %v1843
      %v1867 = vsel %vm776, %v1843, %v1845
      %v1868 = vsel %vm776, %v1847, %v1849
      %v1869 = vsel %vm776, %v1849, %v1851
      %v1870 = vsel %vm776, %v1851, %v1853
      %v1871 = vsel %vm776, %v1855, %v1857
      %v1872 = vsel %vm776, %v1857, %v1859
      %v1873 = vsel %vm776, %v1859, %v1861
      %1886 = vrot.lane.b32.xlu0 %v1462, 78
      %v1887 = vpop.permute.xlu0 %1886
      %1888 = vrot.lane.b32.xlu0 %v1463, 78
      %v1889 = vpop.permute.xlu0 %1888
      %1890 = vrot.lane.b32.xlu0 %v1464, 78
      %v1891 = vpop.permute.xlu0 %1890
      %1892 = vrot.lane.b32.xlu0 %v1465, 78
      %v1893 = vpop.permute.xlu0 %1892
      %1894 = vrot.lane.b32.xlu0 %v1466, 78
      %v1895 = vpop.permute.xlu0 %1894
      %1896 = vrot.lane.b32.xlu0 %v1467, 78
      %v1897 = vpop.permute.xlu0 %1896
      %1898 = vrot.lane.b32.xlu0 %v1468, 78
      %v1899 = vpop.permute.xlu0 %1898
      %1900 = vrot.lane.b32.xlu0 %v1469, 78
      %v1901 = vpop.permute.xlu0 %1900
      %1902 = vrot.lane.b32.xlu0 %v1470, 78
      %v1903 = vpop.permute.xlu0 %1902
      %1904 = vrot.lane.b32.xlu0 %v1471, 78
      %v1905 = vpop.permute.xlu0 %1904
      %1906 = vrot.lane.b32.xlu0 %v1472, 78
      %v1907 = vpop.permute.xlu0 %1906
      %1908 = vrot.lane.b32.xlu0 %v1473, 78
      %v1909 = vpop.permute.xlu0 %1908
      %1910 = vrot.lane.b32.xlu0 %v1474, 78
      %v1911 = vpop.permute.xlu0 %1910
      %1912 = vrot.lane.b32.xlu0 %v1475, 78
      %v1913 = vpop.permute.xlu0 %1912
      %1914 = vrot.lane.b32.xlu0 %v1476, 78
      %v1915 = vpop.permute.xlu0 %1914
      %1916 = vrot.lane.b32.xlu0 %v1477, 78
      %v1917 = vpop.permute.xlu0 %1916
      %v1918 = vsel %vm833, %v1887, %v1889
      %v1919 = vsel %vm833, %v1889, %v1891
      %v1920 = vsel %vm833, %v1891, %v1893
      %v1921 = vsel %vm833, %v1895, %v1897
      %v1922 = vsel %vm833, %v1897, %v1899
      %v1923 = vsel %vm833, %v1899, %v1901
      %v1924 = vsel %vm833, %v1903, %v1905
      %v1925 = vsel %vm833, %v1905, %v1907
      %v1926 = vsel %vm833, %v1907, %v1909
      %v1927 = vsel %vm833, %v1911, %v1913
      %v1928 = vsel %vm833, %v1913, %v1915
      %v1929 = vsel %vm833, %v1915, %v1917
      %v1942 = vld [vmem:[%s5] sm:$0xff]
      %v1943 = vld [vmem:[%s5 + $0x8] sm:$0xff]
      %v1944 = vld [vmem:[%s5 + $0x10] sm:$0xff]
      %v1945 = vld [vmem:[%s5 + $0x18] sm:$0xff]
      %v1946 = vld [vmem:[%s5 + $0x20] sm:$0xff]
      %v1947 = vld [vmem:[%s5 + $0x28] sm:$0xff]
      %v1948 = vld [vmem:[%s5 + $0x30] sm:$0xff]
      %v1949 = vld [vmem:[%s5 + $0x38] sm:$0xff]
      %v1950 = vld [vmem:[%s5 + $0x40] sm:$0xff]
      %v1951 = vld [vmem:[%s5 + $0x48] sm:$0xff]
      %v1952 = vld [vmem:[%s5 + $0x50] sm:$0xff]
      %v1953 = vld [vmem:[%s5 + $0x58] sm:$0xff]
      %v1955 = vsel %vm870, %v1944, 0
      %v1958 = vsel %vm870, %v1947, 0
      %v1961 = vsel %vm870, %v1950, 0
      %v1964 = vsel %vm870, %v1953, 0
      %1966 = vmatpush.msra.mxu0 %v1647
      %1967 = vmatpush.msra.mxu0 %v1644
      %1968 = vmatpush.msra.mxu0 %v1641
      %1969 = vmatpush.msra.mxu0 %v1638
      %1970 = vmatpush.msra.mxu0 %v1591
      %1971 = vmatpush.msra.mxu0 %v1588
      %1972 = vmatpush.msra.mxu0 %v1585
      %1973 = vmatpush.msra.mxu0 %v1582
      %1974 = vmatpush.msra.mxu0 %v1535
      %1975 = vmatpush.msra.mxu0 %v1532
      %1976 = vmatpush.msra.mxu0 %v1529
      %1977 = vmatpush.msra.mxu0 %v1526
      %1978 = vmatpush.msra.mxu0 %v1474
      %1979 = vmatpush.msra.mxu0 %v1470
      %1980 = vmatpush.msra.mxu0 %v1466
      %1981 = vmatpush.msra.mxu0 %v1462
      %1982 = vmatmul.f32.gmra.mxu0 %v1942
      %v1983 = vpop.f32.mrf.mxu0
      %v1984 = vadd.f32 0.0, %v1983
      %1985 = vmatmul.f32.gmra.mxu0 %v1945
      %v1986 = vpop.f32.mrf.mxu0
      %v1987 = vadd.f32 0.0, %v1986
      %1988 = vmatmul.f32.gmra.mxu0 %v1948
      %v1989 = vpop.f32.mrf.mxu0
      %v1990 = vadd.f32 0.0, %v1989
      %1991 = vmatmul.f32.gmra.mxu0 %v1951
      %v1992 = vpop.f32.mrf.mxu0
      %v1993 = vadd.f32 0.0, %v1992
      %1994 = vdwg.mxu0
      %1995 = vmatpush.msra.mxu0 %v1871
      %1996 = vmatpush.msra.mxu0 %v1868
      %1997 = vmatpush.msra.mxu0 %v1865
      %1998 = vmatpush.msra.mxu0 %v1862
      %1999 = vmatpush.msra.mxu0 %v1815
      %2000 = vmatpush.msra.mxu0 %v1812
      %2001 = vmatpush.msra.mxu0 %v1809
      %2002 = vmatpush.msra.mxu0 %v1806
      %2003 = vmatpush.msra.mxu0 %v1759
      %2004 = vmatpush.msra.mxu0 %v1756
      %2005 = vmatpush.msra.mxu0 %v1753
      %2006 = vmatpush.msra.mxu0 %v1750
      %2007 = vmatpush.msra.mxu0 %v1703
      %2008 = vmatpush.msra.mxu0 %v1700
      %2009 = vmatpush.msra.mxu0 %v1697
      %2010 = vmatpush.msra.mxu0 %v1694
      %2011 = vmatmul.f32.gmra.mxu0 %v1943
      %v2012 = vpop.f32.mrf.mxu0
      %v2013 = vadd.f32 %v1984, %v2012
      %2014 = vmatmul.f32.gmra.mxu0 %v1946
      %v2015 = vpop.f32.mrf.mxu0
      %v2016 = vadd.f32 %v1987, %v2015
      %2017 = vmatmul.f32.gmra.mxu0 %v1949
      %v2018 = vpop.f32.mrf.mxu0
      %v2019 = vadd.f32 %v1990, %v2018
      %2020 = vmatmul.f32.gmra.mxu0 %v1952
      %v2021 = vpop.f32.mrf.mxu0
      %v2022 = vadd.f32 %v1993, %v2021
      %2023 = vdwg.mxu0
      %2024 = vmatpush.msra.mxu0 0.0
      %2025 = vmatpush.msra.mxu0 0.0
      %2026 = vmatpush.msra.mxu0 0.0
      %2027 = vmatpush.msra.mxu0 0.0
      %2028 = vmatpush.msra.mxu0 0.0
      %2029 = vmatpush.msra.mxu0 0.0
      %2030 = vmatpush.msra.mxu0 0.0
      %2031 = vmatpush.msra.mxu0 0.0
      %2032 = vmatpush.msra.mxu0 0.0
      %2033 = vmatpush.msra.mxu0 0.0
      %2034 = vmatpush.msra.mxu0 0.0
      %2035 = vmatpush.msra.mxu0 0.0
      %2036 = vmatpush.msra.mxu0 %v1927
      %2037 = vmatpush.msra.mxu0 %v1924
      %2038 = vmatpush.msra.mxu0 %v1921
      %2039 = vmatpush.msra.mxu0 %v1918
      %2040 = vmatmul.f32.gmra.mxu0 %v1955
      %v2041 = vpop.f32.mrf.mxu0
      %v2042 = vadd.f32 %v2013, %v2041
      %2043 = vmatmul.f32.gmra.mxu0 %v1958
      %v2044 = vpop.f32.mrf.mxu0
      %v2045 = vadd.f32 %v2016, %v2044
      %2046 = vmatmul.f32.gmra.mxu0 %v1961
      %v2047 = vpop.f32.mrf.mxu0
      %v2048 = vadd.f32 %v2019, %v2047
      %2049 = vmatmul.f32.gmra.mxu0 %v1964
      %v2050 = vpop.f32.mrf.mxu0
      %v2051 = vadd.f32 %v2022, %v2050
      %2052 = vdwg.mxu0
      %2053 = vmatpush.msra.mxu0 %v1648
      %2054 = vmatpush.msra.mxu0 %v1645
      %2055 = vmatpush.msra.mxu0 %v1642
      %2056 = vmatpush.msra.mxu0 %v1639
      %2057 = vmatpush.msra.mxu0 %v1592
      %2058 = vmatpush.msra.mxu0 %v1589
      %2059 = vmatpush.msra.mxu0 %v1586
      %2060 = vmatpush.msra.mxu0 %v1583
      %2061 = vmatpush.msra.mxu0 %v1536
      %2062 = vmatpush.msra.mxu0 %v1533
      %2063 = vmatpush.msra.mxu0 %v1530
      %2064 = vmatpush.msra.mxu0 %v1527
      %2065 = vmatpush.msra.mxu0 %v1475
      %2066 = vmatpush.msra.mxu0 %v1471
      %2067 = vmatpush.msra.mxu0 %v1467
      %2068 = vmatpush.msra.mxu0 %v1463
      %2069 = vmatmul.f32.gmra.mxu0 %v1942
      %v2070 = vpop.f32.mrf.mxu0
      %v2071 = vadd.f32 0.0, %v2070
      %2072 = vmatmul.f32.gmra.mxu0 %v1945
      %v2073 = vpop.f32.mrf.mxu0
      %v2074 = vadd.f32 0.0, %v2073
      %2075 = vmatmul.f32.gmra.mxu0 %v1948
      %v2076 = vpop.f32.mrf.mxu0
      %v2077 = vadd.f32 0.0, %v2076
      %2078 = vmatmul.f32.gmra.mxu0 %v1951
      %v2079 = vpop.f32.mrf.mxu0
      %v2080 = vadd.f32 0.0, %v2079
      %2081 = vdwg.mxu0
      %2082 = vmatpush.msra.mxu0 %v1872
      %2083 = vmatpush.msra.mxu0 %v1869
      %2084 = vmatpush.msra.mxu0 %v1866
      %2085 = vmatpush.msra.mxu0 %v1863
      %2086 = vmatpush.msra.mxu0 %v1816
      %2087 = vmatpush.msra.mxu0 %v1813
      %2088 = vmatpush.msra.mxu0 %v1810
      %2089 = vmatpush.msra.mxu0 %v1807
      %2090 = vmatpush.msra.mxu0 %v1760
      %2091 = vmatpush.msra.mxu0 %v1757
      %2092 = vmatpush.msra.mxu0 %v1754
      %2093 = vmatpush.msra.mxu0 %v1751
      %2094 = vmatpush.msra.mxu0 %v1704
      %2095 = vmatpush.msra.mxu0 %v1701
      %2096 = vmatpush.msra.mxu0 %v1698
      %2097 = vmatpush.msra.mxu0 %v1695
      %2098 = vmatmul.f32.gmra.mxu0 %v1943
      %v2099 = vpop.f32.mrf.mxu0
      %v2100 = vadd.f32 %v2071, %v2099
      %2101 = vmatmul.f32.gmra.mxu0 %v1946
      %v2102 = vpop.f32.mrf.mxu0
      %v2103 = vadd.f32 %v2074, %v2102
      %2104 = vmatmul.f32.gmra.mxu0 %v1949
      %v2105 = vpop.f32.mrf.mxu0
      %v2106 = vadd.f32 %v2077, %v2105
      %2107 = vmatmul.f32.gmra.mxu0 %v1952
      %v2108 = vpop.f32.mrf.mxu0
      %v2109 = vadd.f32 %v2080, %v2108
      %2110 = vdwg.mxu0
      %2111 = vmatpush.msra.mxu0 0.0
      %2112 = vmatpush.msra.mxu0 0.0
      %2113 = vmatpush.msra.mxu0 0.0
      %2114 = vmatpush.msra.mxu0 0.0
      %2115 = vmatpush.msra.mxu0 0.0
      %2116 = vmatpush.msra.mxu0 0.0
      %2117 = vmatpush.msra.mxu0 0.0
      %2118 = vmatpush.msra.mxu0 0.0
      %2119 = vmatpush.msra.mxu0 0.0
      %2120 = vmatpush.msra.mxu0 0.0
      %2121 = vmatpush.msra.mxu0 0.0
      %2122 = vmatpush.msra.mxu0 0.0
      %2123 = vmatpush.msra.mxu0 %v1928
      %2124 = vmatpush.msra.mxu0 %v1925
      %2125 = vmatpush.msra.mxu0 %v1922
      %2126 = vmatpush.msra.mxu0 %v1919
      %2127 = vmatmul.f32.gmra.mxu0 %v1955
      %v2128 = vpop.f32.mrf.mxu0
      %v2129 = vadd.f32 %v2100, %v2128
      %2130 = vmatmul.f32.gmra.mxu0 %v1958
      %v2131 = vpop.f32.mrf.mxu0
      %v2132 = vadd.f32 %v2103, %v2131
      %2133 = vmatmul.f32.gmra.mxu0 %v1961
      %v2134 = vpop.f32.mrf.mxu0
      %v2135 = vadd.f32 %v2106, %v2134
      %2136 = vmatmul.f32.gmra.mxu0 %v1964
      %v2137 = vpop.f32.mrf.mxu0
      %v2138 = vadd.f32 %v2109, %v2137
      %2139 = vdwg.mxu0
      %2140 = vmatpush.msra.mxu0 %v1649
      %2141 = vmatpush.msra.mxu0 %v1646
      %2142 = vmatpush.msra.mxu0 %v1643
      %2143 = vmatpush.msra.mxu0 %v1640
      %2144 = vmatpush.msra.mxu0 %v1593
      %2145 = vmatpush.msra.mxu0 %v1590
      %2146 = vmatpush.msra.mxu0 %v1587
      %2147 = vmatpush.msra.mxu0 %v1584
      %2148 = vmatpush.msra.mxu0 %v1537
      %2149 = vmatpush.msra.mxu0 %v1534
      %2150 = vmatpush.msra.mxu0 %v1531
      %2151 = vmatpush.msra.mxu0 %v1528
      %2152 = vmatpush.msra.mxu0 %v1476
      %2153 = vmatpush.msra.mxu0 %v1472
      %2154 = vmatpush.msra.mxu0 %v1468
      %2155 = vmatpush.msra.mxu0 %v1464
      %2156 = vmatmul.f32.gmra.mxu0 %v1942
      %v2157 = vpop.f32.mrf.mxu0
      %v2158 = vadd.f32 0.0, %v2157
      %2159 = vmatmul.f32.gmra.mxu0 %v1945
      %v2160 = vpop.f32.mrf.mxu0
      %v2161 = vadd.f32 0.0, %v2160
      %2162 = vmatmul.f32.gmra.mxu0 %v1948
      %v2163 = vpop.f32.mrf.mxu0
      %v2164 = vadd.f32 0.0, %v2163
      %2165 = vmatmul.f32.gmra.mxu0 %v1951
      %v2166 = vpop.f32.mrf.mxu0
      %v2167 = vadd.f32 0.0, %v2166
      %2168 = vdwg.mxu0
      %2169 = vmatpush.msra.mxu0 %v1873
      %2170 = vmatpush.msra.mxu0 %v1870
      %2171 = vmatpush.msra.mxu0 %v1867
      %2172 = vmatpush.msra.mxu0 %v1864
      %2173 = vmatpush.msra.mxu0 %v1817
      %2174 = vmatpush.msra.mxu0 %v1814
      %2175 = vmatpush.msra.mxu0 %v1811
      %2176 = vmatpush.msra.mxu0 %v1808
      %2177 = vmatpush.msra.mxu0 %v1761
      %2178 = vmatpush.msra.mxu0 %v1758
      %2179 = vmatpush.msra.mxu0 %v1755
      %2180 = vmatpush.msra.mxu0 %v1752
      %2181 = vmatpush.msra.mxu0 %v1705
      %2182 = vmatpush.msra.mxu0 %v1702
      %2183 = vmatpush.msra.mxu0 %v1699
      %2184 = vmatpush.msra.mxu0 %v1696
      %2185 = vmatmul.f32.gmra.mxu0 %v1943
      %v2186 = vpop.f32.mrf.mxu0
      %v2187 = vadd.f32 %v2158, %v2186
      %2188 = vmatmul.f32.gmra.mxu0 %v1946
      %v2189 = vpop.f32.mrf.mxu0
      %v2190 = vadd.f32 %v2161, %v2189
      %2191 = vmatmul.f32.gmra.mxu0 %v1949
      %v2192 = vpop.f32.mrf.mxu0
      %v2193 = vadd.f32 %v2164, %v2192
      %2194 = vmatmul.f32.gmra.mxu0 %v1952
      %v2195 = vpop.f32.mrf.mxu0
      %v2196 = vadd.f32 %v2167, %v2195
      %2197 = vdwg.mxu0
      %2198 = vmatpush.msra.mxu0 0.0
      %2199 = vmatpush.msra.mxu0 0.0
      %2200 = vmatpush.msra.mxu0 0.0
      %2201 = vmatpush.msra.mxu0 0.0
      %2202 = vmatpush.msra.mxu0 0.0
      %2203 = vmatpush.msra.mxu0 0.0
      %2204 = vmatpush.msra.mxu0 0.0
      %2205 = vmatpush.msra.mxu0 0.0
      %2206 = vmatpush.msra.mxu0 0.0
      %2207 = vmatpush.msra.mxu0 0.0
      %2208 = vmatpush.msra.mxu0 0.0
      %2209 = vmatpush.msra.mxu0 0.0
      %2210 = vmatpush.msra.mxu0 %v1929
      %2211 = vmatpush.msra.mxu0 %v1926
      %2212 = vmatpush.msra.mxu0 %v1923
      %2213 = vmatpush.msra.mxu0 %v1920
      %2214 = vmatmul.f32.gmra.mxu0 %v1955
      %v2215 = vpop.f32.mrf.mxu0
      %v2216 = vadd.f32 %v2187, %v2215
      %2217 = vmatmul.f32.gmra.mxu0 %v1958
      %v2218 = vpop.f32.mrf.mxu0
      %v2219 = vadd.f32 %v2190, %v2218
      %2220 = vmatmul.f32.gmra.mxu0 %v1961
      %v2221 = vpop.f32.mrf.mxu0
      %v2222 = vadd.f32 %v2193, %v2221
      %2223 = vmatmul.f32.gmra.mxu0 %v1964
      %v2224 = vpop.f32.mrf.mxu0
      %v2225 = vadd.f32 %v2196, %v2224
      %2226 = vdwg.mxu0
      %v2227 = vld [vmem:[%s6] sm:$0xff]
      %v2228 = vld [vmem:[%s6 + $0x8] sm:$0xff]
      %v2229 = vld [vmem:[%s6 + $0x10] sm:$0xff]
      %v2230 = vld [vmem:[%s6 + $0x18] sm:$0xff]
      %2232 = vset.pattern.permute.xlu0 0
      %2233 = vperm.xlu0 %2232, %v2227
      %v2234 = vpop.permute.xlu0 %2233
      %2237 = vset.pattern.permute.xlu0 0
      %2238 = vperm.xlu0 %2237, %v2228
      %v2239 = vpop.permute.xlu0 %2238
      %2242 = vset.pattern.permute.xlu0 0
      %2243 = vperm.xlu0 %2242, %v2229
      %v2244 = vpop.permute.xlu0 %2243
      %2247 = vset.pattern.permute.xlu0 0
      %2248 = vperm.xlu0 %2247, %v2230
      %v2249 = vpop.permute.xlu0 %2248
      %v2251 = vmul.f32 %v2042, %v2234
      %v2252 = vmul.f32 %v2129, %v2234
      %v2253 = vmul.f32 %v2216, %v2234
      %v2254 = vmul.f32 %v2045, %v2239
      %v2255 = vmul.f32 %v2132, %v2239
      %v2256 = vmul.f32 %v2219, %v2239
      %v2257 = vmul.f32 %v2048, %v2244
      %v2258 = vmul.f32 %v2135, %v2244
      %v2259 = vmul.f32 %v2222, %v2244
      %v2260 = vmul.f32 %v2051, %v2249
      %v2261 = vmul.f32 %v2138, %v2249
      %v2262 = vmul.f32 %v2225, %v2249
      %v2263 = vld [vmem:[%s7] sm:$0xff]
      %v2264 = vld [vmem:[%s7 + $0x8] sm:$0xff]
      %v2265 = vld [vmem:[%s7 + $0x10] sm:$0xff]
      %v2266 = vld [vmem:[%s7 + $0x18] sm:$0xff]
      %2268 = vset.pattern.permute.xlu0 0
      %2269 = vperm.xlu0 %2268, %v2263
      %v2270 = vpop.permute.xlu0 %2269
      %2273 = vset.pattern.permute.xlu0 0
      %2274 = vperm.xlu0 %2273, %v2264
      %v2275 = vpop.permute.xlu0 %2274
      %2278 = vset.pattern.permute.xlu0 0
      %2279 = vperm.xlu0 %2278, %v2265
      %v2280 = vpop.permute.xlu0 %2279
      %2283 = vset.pattern.permute.xlu0 0
      %2284 = vperm.xlu0 %2283, %v2266
      %v2285 = vpop.permute.xlu0 %2284
      %v2287 = vadd.f32 %v2251, %v2270
      %v2288 = vadd.f32 %v2252, %v2270
      %v2289 = vadd.f32 %v2253, %v2270
      %v2290 = vadd.f32 %v2254, %v2275
      %v2291 = vadd.f32 %v2255, %v2275
      %v2292 = vadd.f32 %v2256, %v2275
      %v2293 = vadd.f32 %v2257, %v2280
      %v2294 = vadd.f32 %v2258, %v2280
      %v2295 = vadd.f32 %v2259, %v2280
      %v2296 = vadd.f32 %v2260, %v2285
      %v2297 = vadd.f32 %v2261, %v2285
      %v2298 = vadd.f32 %v2262, %v2285
      %v2299 = vadd.f32 %v2287, %v1288
      %v2300 = vadd.f32 %v2288, %v1289
      %v2301 = vadd.f32 %v2289, %v1290
      %v2302 = vadd.f32 %v2290, %v1291
      %v2303 = vadd.f32 %v2291, %v1292
      %v2304 = vadd.f32 %v2292, %v1293
      %v2305 = vadd.f32 %v2293, %v1294
      %v2306 = vadd.f32 %v2294, %v1295
      %v2307 = vadd.f32 %v2295, %v1296
      %v2308 = vadd.f32 %v2296, %v1297
      %v2309 = vadd.f32 %v2297, %v1298
      %v2310 = vadd.f32 %v2298, %v1299
      %2311 = vst [vmem:[%s305] sm:$0xff] %v2299
      %2312 = vst [vmem:[%s305 + $0x8] sm:$0xff] %v2300
      %2313 = vst [vmem:[%s305 + $0x10] sm:$0xff] %v2301
      %2314 = vst [vmem:[%s305 + $0x18] sm:$0xff] %v2302
      %2315 = vst [vmem:[%s305 + $0x20] sm:$0xff] %v2303
      %2316 = vst [vmem:[%s305 + $0x28] sm:$0xff] %v2304
      %2317 = vst [vmem:[%s305 + $0x30] sm:$0xff] %v2305
      %2318 = vst [vmem:[%s305 + $0x38] sm:$0xff] %v2306
      %2319 = vst [vmem:[%s305 + $0x40] sm:$0xff] %v2307
      %2320 = vst [vmem:[%s305 + $0x48] sm:$0xff] %v2308
      %2321 = vst [vmem:[%s305 + $0x50] sm:$0xff] %v2309
      %2322 = vst [vmem:[%s305 + $0x58] sm:$0xff] %v2310
      %p2323 = scmp.lt.s32.totalorder %s19, 1
      %s2324 = scalar_select %p2323, %s19, 1
      %s2325 = smul.addr %s2324, 12
      %s2326 = smul.addr %s2325, 8
      %s2327 = scalar_lea.vmem %s8, %s2326
      // Predicated region
      $region53: #{bireal_basic_block_forward.1} parent=51 // pred_check
        %p2328 = pneg %p210
      $region54: #{bireal_basic_block_forward.1} parent=51 // pred_check_branch
        %2330 = sbr.rel (%p2328) target = $region56
      $region55: #{bireal_basic_block_forward.1} parent=51 // pred_region
        _
      $region56: #{bireal_basic_block_forward.1} parent=51 // pred_fallthru
        _
    $region52: #{bireal_basic_block_forward.1} parent=5 // pred_fallthru
      _
    %p2331 = scmp.le.s32.totalorder 2, %s14
    // Predicated region
    $region57: #{bireal_basic_block_forward.1} parent=5 // pred_check
      %p2332 = pneg %p2331
    $region58: #{bireal_basic_block_forward.1} parent=5 // pred_check_branch
      %2334 = sbr.rel (%p2332) target = $region60
    $region59: #{bireal_basic_block_forward.1} parent=5 // pred_region
      %s2335 = ssub.s32 %s14, 2
      // Predicated region
      $region61: #{bireal_basic_block_forward.1} parent=59 // pred_check
        %p2336 = pneg %p216
      $region62: #{bireal_basic_block_forward.1} parent=59 // pred_check_branch
        %2338 = sbr.rel (%p2336) target = $region64
      $region63: #{bireal_basic_block_forward.1} parent=59 // pred_region
        %p2339 = scmp.lt.s32.totalorder %s20, 1
        %s2340 = scalar_select %p2339, %s20, 1
        %s2341 = smul.addr %s2340, 12
        %s2342 = smul.addr %s2341, 8
        %s2343 = scalar_lea.vmem %s8, %s2342
      $region64: #{bireal_basic_block_forward.1} parent=59 // pred_fallthru
        _
    $region60: #{bireal_basic_block_forward.1} parent=5 // pred_fallthru
      _
  $region6: #{bireal_basic_block_forward.1} parent=0 // loop_footer
    %s18 = sadd.s32 1, %s14
  $region7: #{bireal_basic_block_forward.1} parent=0 // loop_footer_branch
    %13 = sbr.rel target = $region3
  $region8: #{bireal_basic_block_forward.1} parent=0 // loop_exit
    _

</llo_original>
